<compile_context>
chip_gen: v7x
topology: tpu7x:2x2x1
jax: 0.10.0
libtpu: 0.0.40
codegen_flags: <defaults>
</compile_context>

<pallas_src>
import functools
import math

import jax
import jax.numpy as jnp
from jax.experimental import pallas as pl
from jax.experimental.pallas import tpu as pltpu

_EPS = 1e-12  # matches torch.nn.functional.normalize eps


def _round_up(v, m):
    return (v + m - 1) // m * m


# ----------------------- Stage 1: linear + l2 normalize --------------------- #

def _feature_kernel(x_ref, wp_ref, bp_ref, h_ref, *, f_norm, scale):
    # h = x @ Wp + bp  (Wp: [F_in, F_pad]; padding lanes of Wp/bp are zero)
    h = jnp.dot(x_ref[...], wp_ref[...], preferred_element_type=jnp.float32)
    h = h + bp_ref[...]
    lane = jax.lax.broadcasted_iota(jnp.int32, h.shape, 1)
    norm_mask = lane < f_norm
    # l2-normalize only lanes [0:f_norm]; other lanes pass through unscaled.
    ss = jnp.sum(jnp.where(norm_mask, h * h, 0.0), axis=1, keepdims=True)
    # max(sqrt(ss), eps) == sqrt(max(ss, eps^2)); rsqrt is a single EUP op.
    s = scale * jax.lax.rsqrt(jnp.maximum(ss, _EPS * _EPS))
    h_ref[...] = jnp.where(norm_mask, h * s, h).astype(h_ref.dtype)


def _compute_features(x_pad, wp, bp, f_norm, scale, block_m, out_dtype):
    n_pad, f_in = x_pad.shape
    f_pad = wp.shape[1]
    kernel = functools.partial(_feature_kernel, f_norm=f_norm, scale=scale)
    return pl.pallas_call(
        kernel,
        out_shape=jax.ShapeDtypeStruct((n_pad, f_pad), out_dtype),
        grid_spec=pltpu.PrefetchScalarGridSpec(
            num_scalar_prefetch=0,
            grid=(n_pad // block_m,),
            in_specs=[pl.BlockSpec((block_m, f_in), lambda i: (i, 0)),
                      pl.BlockSpec((f_in, f_pad), lambda i: (0, 0)),
                      pl.BlockSpec((1, f_pad), lambda i: (0, 0))],
            out_specs=pl.BlockSpec((block_m, f_pad), lambda i: (i, 0)),
        ),
        compiler_params=pltpu.CompilerParams(
            dimension_semantics=("parallel",),
            vmem_limit_bytes=32 * 1024 * 1024),
    )(x_pad, wp, bp)


# --------------------- Stage 2: tiled APPNP propagation --------------------- #

def _propagate_kernel(a_ref, h_ref, o_ref, acc_ref):
    @pl.when(pl.program_id(1) == 0)
    def _():
        acc_ref[...] = jnp.zeros_like(acc_ref)

    acc_ref[...] += jnp.dot(a_ref[...], h_ref[...],
                            preferred_element_type=jnp.float32)

    @pl.when(pl.program_id(1) == pl.num_programs(1) - 1)
    def _():
        o_ref[...] = acc_ref[...].astype(o_ref.dtype)


def _propagate(a_pad, h_pad, block_m, block_k, out_dtype):
    n_pad = a_pad.shape[0]
    f_pad = h_pad.shape[1]
    return pl.pallas_call(
        _propagate_kernel,
        out_shape=jax.ShapeDtypeStruct((n_pad, f_pad), out_dtype),
        grid_spec=pltpu.PrefetchScalarGridSpec(
            num_scalar_prefetch=0,
            grid=(n_pad // block_m, n_pad // block_k),
            in_specs=[pl.BlockSpec((block_m, block_k), lambda i, k: (i, k)),
                      pl.BlockSpec((block_k, f_pad), lambda i, k: (k, 0))],
            out_specs=pl.BlockSpec((block_m, f_pad), lambda i, k: (i, 0)),
            scratch_shapes=[pltpu.VMEM((block_m, f_pad), jnp.float32)],
        ),
        compiler_params=pltpu.CompilerParams(
            dimension_semantics=("parallel", "arbitrary"),
            vmem_limit_bytes=32 * 1024 * 1024),
    )(a_pad, h_pad)


# -------------------------------- JAX glue ---------------------------------- #

def gcn_norm_dense(edge_index, num_nodes, dtype=jnp.float32):
    """Dense Ahat = D^-1/2 (A + I) D^-1/2 (PyG gcn_norm, add_self_loops).

    Notes: assumes a coalesced, symmetric edge_index (as in the test); for
    directed / duplicated edges PyG's normalization would differ.
    """
    src, dst = edge_index[0], edge_index[1]
    a = jnp.zeros((num_nodes, num_nodes), dtype).at[dst, src].add(
        jnp.asarray(1.0, dtype))
    a = a + jnp.eye(num_nodes, dtype=dtype)
    deg = jnp.sum(a, axis=1)
    dinv = jnp.where(deg > 0, 1.0 / jnp.sqrt(deg), 0.0)
    return a * dinv[:, None] * dinv[None, :]


def init_params(key, in_channels, out_channels, dtype=jnp.float32):
    """nn.Linear-style init: U(-1/sqrt(fan_in), 1/sqrt(fan_in))."""
    k1, k2, k3, k4 = jax.random.split(key, 4)
    bound = 1.0 / jnp.sqrt(jnp.asarray(in_channels, dtype))
    return {
        "w1": jax.random.uniform(k1, (out_channels, in_channels), dtype, -bound, bound),
        "b1": jax.random.uniform(k2, (out_channels,), dtype, -bound, bound),
        "w2": jax.random.uniform(k3, (out_channels, in_channels), dtype, -bound, bound),
        "b2": jax.random.uniform(k4, (out_channels,), dtype, -bound, bound),
    }


@functools.partial(jax.jit,
                   static_argnames=("model", "mxu_dtype", "block_m", "block_k"))
def vgnae_encoder(x, edge_index, params, model="VGAE",
                  mxu_dtype=jnp.bfloat16, block_m=256, block_k=256):
    n, f_in = x.shape
    f_out = params["w1"].shape[0]
    dtype = x.dtype

    if model not in ("GAE", "VGAE"):
        return x

    # Dense symmetric-normalized adjacency (APPNP with K=1, alpha=0).
    # TODO(synk): for large/sparse graphs replace the dense Ahat with a
    # scalar-prefetch-driven sparse (CSR) aggregation kernel.
    a_hat = gcn_norm_dense(edge_index, n, dtype)

    n_pad = _round_up(n, math.lcm(block_m, block_k))
    f_used = f_out if model == "GAE" else 2 * f_out
    f_pad = _round_up(f_used, 128)          # lane-dense outputs

    # Packed weights: lanes [0:f_out] -> branch that gets F.normalize()*scale;
    # for VGAE, lanes [f_out:2*f_out] -> un-normalized linear1 (logstd branch).
    wp = jnp.zeros((f_in, f_pad), dtype)
    bp = jnp.zeros((1, f_pad), dtype)
    if model == "GAE":
        wp = wp.at[:, :f_out].set(params["w1"].T.astype(dtype))
        bp = bp.at[:, :f_out].set(params["b1"].astype(dtype))
        scale = 1.8
    else:
        wp = wp.at[:, :f_out].set(params["w2"].T.astype(dtype))
        bp = bp.at[:, :f_out].set(params["b2"].astype(dtype))
        wp = wp.at[:, f_out:2 * f_out].set(params["w1"].T.astype(dtype))
        bp = bp.at[:, f_out:2 * f_out].set(params["b1"].astype(dtype))
        scale = 0.4

    # Zero-pad N (padded A rows/cols are zero => no effect on real outputs).
    x_pad = jnp.zeros((n_pad, f_in), dtype).at[:n].set(x)
    a_pad = jnp.zeros((n_pad, n_pad), mxu_dtype).at[:n, :n].set(
        a_hat.astype(mxu_dtype))

    # Stage 1: packed features, emitted in the propagation MXU dtype.
    h_pad = _compute_features(x_pad, wp, bp, f_out, scale, block_m, mxu_dtype)
    # Stage 2: tiled, pipelined Ahat @ H with f32 accumulation.
    out = _propagate(a_pad, h_pad, block_m, block_k, dtype)

    if model == "GAE":
        return out[:n, :f_out]
    mu = out[:n, :f_out]
    logstd = out[:n, f_out:2 * f_out]
    return mu, logstd


# Pure-JAX reference for correctness checks.
def _reference(x, edge_index, params, model):
    a_hat = gcn_norm_dense(edge_index, x.shape[0], x.dtype)

    def l2norm(v):
        return v / jnp.maximum(jnp.linalg.norm(v, axis=1, keepdims=True), _EPS)

    if model == "GAE":
        h = x @ params["w1"].T + params["b1"]
        return a_hat @ (l2norm(h) * 1.8)
    h1 = x @ params["w1"].T + params["b1"]
    logstd = a_hat @ h1
    h2 = x @ params["w2"].T + params["b2"]
    mu = a_hat @ (l2norm(h2) * 0.4)
    return mu, logstd


if __name__ == "__main__":
    key = jax.random.PRNGKey(0)
    k_x, k_p = jax.random.split(key)

    num_nodes = 16
    in_channels = 32
    out_channels = 16

    x = jax.random.normal(k_x, (num_nodes, in_channels), jnp.float32)
    params = init_params(k_p, in_channels, out_channels)

    # Deterministic ring graph, both directions -> edge_index [2, 32]
    src = jnp.arange(num_nodes, dtype=jnp.int32)
    dst = (src + 1) % num_nodes
    edge_index = jnp.stack([jnp.concatenate([src, dst]),
                            jnp.concatenate([dst, src])], axis=0)

    mu_ref, logstd_ref = _reference(x, edge_index, params, "VGAE")
    z_ref = _reference(x, edge_index, params, "GAE")

    # f32 MXU path: tight check against the pure-JAX reference.
    mu, logstd = vgnae_encoder(x, edge_index, params, model="VGAE",
                               mxu_dtype=jnp.float32)
    mu, logstd = jax.block_until_ready(mu), jax.block_until_ready(logstd)
    assert jnp.allclose(mu, mu_ref, atol=2e-4, rtol=2e-4)
    assert jnp.allclose(logstd, logstd_ref, atol=2e-4, rtol=2e-4)

    z = jax.block_until_ready(
        vgnae_encoder(x, edge_index, params, model="GAE",
                      mxu_dtype=jnp.float32))
    assert jnp.allclose(z, z_ref, atol=2e-4, rtol=2e-4)

    # Default bf16 propagation operands (HBM-bound A stream halved): looser check.
    mu_bf, logstd_bf = vgnae_encoder(x, edge_index, params, model="VGAE")
    mu_bf = jax.block_until_ready(mu_bf)
    logstd_bf = jax.block_until_ready(logstd_bf)
    assert jnp.allclose(mu_bf, mu_ref, atol=3e-2, rtol=3e-2)
    assert jnp.allclose(logstd_bf, logstd_ref, atol=3e-2, rtol=3e-2)

    z_bf = jax.block_until_ready(
        vgnae_encoder(x, edge_index, params, model="GAE"))
    assert jnp.allclose(z_bf, z_ref, atol=5e-2, rtol=5e-2)

    print("KERNEL_OK")
</pallas_src>

<mosaic_0001>
module attributes {stable_mosaic.version = 11 : i64} {
  func.func private @main(%arg0: i32) attributes {dimension_semantics = [#tpu.dimension_semantics<core_parallel>], iteration_bounds = array<i64: 2>, tpu.core_type = #tpu.core_type<sc_scalar_subcore>, window_params = []} {
    return
  }
}

module attributes {stable_mosaic.version = 11 : i64} {
  func.func private @main(%arg0: i32) attributes {dimension_semantics = [#tpu.dimension_semantics<core_parallel>], iteration_bounds = array<i64: 2>, tpu.core_type = #tpu.core_type<sc_scalar_subcore>, window_params = []} {
    return
  }
}

module attributes {stable_mosaic.version = 11 : i64} {
  func.func @_feature_kernel(%arg0: i32, %arg1: memref<256x32xf32, #tpu.memory_space<vmem>>, %arg2: memref<32x128xf32, #tpu.memory_space<vmem>>, %arg3: memref<1x128xf32, #tpu.memory_space<vmem>>, %arg4: memref<256x128xf32, #tpu.memory_space<vmem>>) attributes {dimension_semantics = [#tpu.dimension_semantics<parallel>], iteration_bounds = array<i64: 1>, scalar_prefetch = 0 : i64, scratch_operands = 0 : i64, tpu.core_type = #tpu.core_type<tc>, window_params = [{transform_indices = @transform_0, window_bounds = array<i64: 256, 32>}, {pipeline_mode = #tpu.pipeline_mode<synchronous>, transform_indices = @transform_1, window_bounds = array<i64: 32, 128>}, {pipeline_mode = #tpu.pipeline_mode<synchronous>, transform_indices = @transform_2, window_bounds = array<i64: 1, 128>}, {transform_indices = @transform_3, window_bounds = array<i64: 256, 128>}]} {
    %c0 = arith.constant 0 : index
    %c0_0 = arith.constant 0 : index
    %0 = vector.load %arg1[%c0, %c0_0] : memref<256x32xf32, #tpu.memory_space<vmem>>, vector<256x32xf32>
    %c0_1 = arith.constant 0 : index
    %c0_2 = arith.constant 0 : index
    %1 = vector.load %arg2[%c0_1, %c0_2] : memref<32x128xf32, #tpu.memory_space<vmem>>, vector<32x128xf32>
    %cst = arith.constant dense<0.000000e+00> : vector<256x128xf32>
    %2 = tpu.matmul %0, %1, %cst {dimension_numbers = #tpu.dot_dimension_numbers<[1], [0], [0], [1], [0, 0, 1, 1], [], []>} : vector<256x32xf32>, vector<32x128xf32>, vector<256x128xf32> -> vector<256x128xf32>
    %c0_3 = arith.constant 0 : index
    %c0_4 = arith.constant 0 : index
    %3 = vector.load %arg3[%c0_3, %c0_4] : memref<1x128xf32, #tpu.memory_space<vmem>>, vector<1x128xf32>
    %4 = vector.broadcast %3 : vector<1x128xf32> to vector<256x128xf32>
    %5 = arith.addf %2, %4 : vector<256x128xf32>
    %6 = tpu.iota {dimensions = array<i32: 1>} : vector<256x128xi32>
    %c16_i32 = arith.constant 16 : i32
    %7 = vector.broadcast %c16_i32 : i32 to vector<256x128xi32>
    %8 = arith.cmpi slt, %6, %7 : vector<256x128xi32>
    %9 = arith.mulf %5, %5 : vector<256x128xf32>
    %cst_5 = arith.constant 0.000000e+00 : f32
    %10 = vector.broadcast %cst_5 : f32 to vector<256x128xf32>
    %11 = arith.select %8, %9, %10 : vector<256x128xi1>, vector<256x128xf32>
    %cst_6 = arith.constant dense<0.000000e+00> : vector<256xf32>
    %12 = vector.multi_reduction <add>, %11, %cst_6 [1] : vector<256x128xf32> to vector<256xf32>
    %13 = vector.shape_cast %12 : vector<256xf32> to vector<256x1xf32>
    %cst_7 = arith.constant 1.000000e-24 : f32
    %14 = vector.broadcast %cst_7 : f32 to vector<256x1xf32>
    %15 = arith.maximumf %13, %14 : vector<256x1xf32>
    %16 = math.rsqrt %15 : vector<256x1xf32>
    %cst_8 = arith.constant 4.000000e-01 : f32
    %17 = vector.broadcast %cst_8 : f32 to vector<256x1xf32>
    %18 = arith.mulf %17, %16 : vector<256x1xf32>
    %19 = vector.broadcast %18 : vector<256x1xf32> to vector<256x128xf32>
    %20 = arith.mulf %5, %19 : vector<256x128xf32>
    %21 = arith.select %8, %20, %5 : vector<256x128xi1>, vector<256x128xf32>
    %c0_9 = arith.constant 0 : index
    %c0_10 = arith.constant 0 : index
    %22 = vector.load %arg4[%c0_9, %c0_10] : memref<256x128xf32, #tpu.memory_space<vmem>>, vector<256x128xf32>
    tpu.vector_store %arg4[%c0_9, %c0_10], %21 {strides = array<i32>} : memref<256x128xf32, #tpu.memory_space<vmem>>, vector<256x128xf32>,
    return
  }
  func.func @transform_0(%arg0: i32) -> (i32, i32) {
    %c0_i32 = arith.constant 0 : i32
    %c0_i32_0 = arith.constant 0 : i32
    return %arg0, %c0_i32 : i32, i32
  }
  func.func @transform_1(%arg0: i32) -> (i32, i32) {
    %c0_i32 = arith.constant 0 : i32
    %c0_i32_0 = arith.constant 0 : i32
    %c0_i32_1 = arith.constant 0 : i32
    return %c0_i32, %c0_i32_0 : i32, i32
  }
  func.func @transform_2(%arg0: i32) -> (i32, i32) {
    %c0_i32 = arith.constant 0 : i32
    %c0_i32_0 = arith.constant 0 : i32
    %c0_i32_1 = arith.constant 0 : i32
    return %c0_i32, %c0_i32_0 : i32, i32
  }
  func.func @transform_3(%arg0: i32) -> (i32, i32) {
    %c0_i32 = arith.constant 0 : i32
    %c0_i32_0 = arith.constant 0 : i32
    return %arg0, %c0_i32 : i32, i32
  }
}

module attributes {stable_mosaic.version = 11 : i64} {
  func.func @_propagate_kernel(%arg0: i32, %arg1: i32, %arg2: memref<256x256xf32, #tpu.memory_space<vmem>>, %arg3: memref<256x128xf32, #tpu.memory_space<vmem>>, %arg4: memref<256x128xf32, #tpu.memory_space<vmem>>, %arg5: memref<256x128xf32, #tpu.memory_space<vmem>>) attributes {dimension_semantics = [#tpu.dimension_semantics<parallel>, #tpu.dimension_semantics<arbitrary>], iteration_bounds = array<i64: 1, 1>, scalar_prefetch = 0 : i64, scratch_operands = 1 : i64, tpu.core_type = #tpu.core_type<tc>, window_params = [{transform_indices = @transform_0, window_bounds = array<i64: 256, 256>}, {transform_indices = @transform_1, window_bounds = array<i64: 256, 128>}, {transform_indices = @transform_2, window_bounds = array<i64: 256, 128>}]} {
    %c0_i32 = arith.constant 0 : i32
    %0 = arith.cmpi eq, %arg1, %c0_i32 : i32
    %1 = arith.extui %0 : i1 to i32
    %c0_i32_0 = arith.constant 0 : i32
    %2 = arith.cmpi ne, %1, %c0_i32_0 : i32
    scf.if %2 {
      %cst_10 = arith.constant 0.000000e+00 : f32
      %12 = vector.broadcast %cst_10 : f32 to vector<256x128xf32>
      %c0_11 = arith.constant 0 : index
      %c0_12 = arith.constant 0 : index
      %13 = vector.load %arg5[%c0_11, %c0_12] : memref<256x128xf32, #tpu.memory_space<vmem>>, vector<256x128xf32>
      tpu.vector_store %arg5[%c0_11, %c0_12], %12 {strides = array<i32>} : memref<256x128xf32, #tpu.memory_space<vmem>>, vector<256x128xf32>,
    } else {
    }
    %c0 = arith.constant 0 : index
    %c0_1 = arith.constant 0 : index
    %3 = vector.load %arg5[%c0, %c0_1] : memref<256x128xf32, #tpu.memory_space<vmem>>, vector<256x128xf32>
    %c0_2 = arith.constant 0 : index
    %c0_3 = arith.constant 0 : index
    %4 = vector.load %arg2[%c0_2, %c0_3] : memref<256x256xf32, #tpu.memory_space<vmem>>, vector<256x256xf32>
    %c0_4 = arith.constant 0 : index
    %c0_5 = arith.constant 0 : index
    %5 = vector.load %arg3[%c0_4, %c0_5] : memref<256x128xf32, #tpu.memory_space<vmem>>, vector<256x128xf32>
    %cst = arith.constant dense<0.000000e+00> : vector<256x128xf32>
    %6 = tpu.matmul %4, %5, %cst {dimension_numbers = #tpu.dot_dimension_numbers<[1], [0], [0], [1], [0, 0, 1, 1], [], []>} : vector<256x256xf32>, vector<256x128xf32>, vector<256x128xf32> -> vector<256x128xf32>
    %7 = arith.addf %3, %6 : vector<256x128xf32>
    %c0_6 = arith.constant 0 : index
    %c0_7 = arith.constant 0 : index
    %8 = vector.load %arg5[%c0_6, %c0_7] : memref<256x128xf32, #tpu.memory_space<vmem>>, vector<256x128xf32>
    tpu.vector_store %arg5[%c0_6, %c0_7], %7 {strides = array<i32>} : memref<256x128xf32, #tpu.memory_space<vmem>>, vector<256x128xf32>,
    %c0_i32_8 = arith.constant 0 : i32
    %9 = arith.cmpi eq, %arg1, %c0_i32_8 : i32
    %10 = arith.extui %9 : i1 to i32
    %c0_i32_9 = arith.constant 0 : i32
    %11 = arith.cmpi ne, %10, %c0_i32_9 : i32
    scf.if %11 {
      %c0_10 = arith.constant 0 : index
      %c0_11 = arith.constant 0 : index
      %12 = vector.load %arg5[%c0_10, %c0_11] : memref<256x128xf32, #tpu.memory_space<vmem>>, vector<256x128xf32>
      %c0_12 = arith.constant 0 : index
      %c0_13 = arith.constant 0 : index
      %13 = vector.load %arg4[%c0_12, %c0_13] : memref<256x128xf32, #tpu.memory_space<vmem>>, vector<256x128xf32>
      tpu.vector_store %arg4[%c0_12, %c0_13], %12 {strides = array<i32>} : memref<256x128xf32, #tpu.memory_space<vmem>>, vector<256x128xf32>,
    } else {
    }
    return
  }
  func.func @transform_0(%arg0: i32, %arg1: i32) -> (i32, i32) {
    %c0_i32 = arith.constant 0 : i32
    return %arg0, %arg1 : i32, i32
  }
  func.func @transform_1(%arg0: i32, %arg1: i32) -> (i32, i32) {
    %c0_i32 = arith.constant 0 : i32
    %c0_i32_0 = arith.constant 0 : i32
    return %arg1, %c0_i32 : i32, i32
  }
  func.func @transform_2(%arg0: i32, %arg1: i32) -> (i32, i32) {
    %c0_i32 = arith.constant 0 : i32
    %c0_i32_0 = arith.constant 0 : i32
    return %arg0, %c0_i32 : i32, i32
  }
}

</mosaic_0001>

<llo_original>
// kernel: vgnae_encoder.2
$region0: #{vgnae_encoder.2}
  #allocation0 [shape = 'u32[]', space=smem, size = 0x4, offset = 0x4, fixed_abs, tag = 'smem constant byte address 0x4 - core index']
  #allocation1 [shape = 'u32[144,128]{1,0:T(1,128)}', space=vmem, size = 0x12000, scoped, tag = 'internal scratch']
  %s0 = inlined_call_operand.vmem [shape: f32[256,32], index: 0, kind: input, shape index: {}]
  %s1 = inlined_call_operand.vmem [shape: f32[32,128], index: 1, kind: input, shape index: {}]
  %s2 = inlined_call_operand.vmem [shape: f32[1,128], index: 2, kind: input, shape index: {}]
  %s3 = inlined_call_operand.vmem [shape: f32[256,128], index: 3, kind: output, shape index: {}]
  %s4 = sld [smem:[#allocation0]]
  $region22: #{vgnae_encoder.2} parent=0
    _
  %s6 = ssub.s32 1, %s4
  %s7 = scalar_select 0, %s6, %s4
  // Predicated region
  $region2: #{vgnae_encoder.2} parent=0 // pred_check
    _
  $region3: #{vgnae_encoder.2} parent=0 // pred_check_branch
    %9 = sbr.rel (0) target = $region5
  $region4: #{vgnae_encoder.2} parent=0 // pred_region
    _
  $region5: #{vgnae_encoder.2} parent=0 // pred_fallthru
    _
  // Predicated region
  $region6: #{vgnae_encoder.2} parent=0 // pred_check
    _
  $region7: #{vgnae_encoder.2} parent=0 // pred_check_branch
    %11 = sbr.rel (0) target = $region9
  $region8: #{vgnae_encoder.2} parent=0 // pred_region
    _
  $region9: #{vgnae_encoder.2} parent=0 // pred_fallthru
    _
  // Predicated region
  $region10: #{vgnae_encoder.2} parent=0 // pred_check
    _
  $region11: #{vgnae_encoder.2} parent=0 // pred_check_branch
    %13 = sbr.rel (0) target = $region13
  $region12: #{vgnae_encoder.2} parent=0 // pred_region
    _
  $region13: #{vgnae_encoder.2} parent=0 // pred_fallthru
    _
  %v14 = vld [vmem:[%s0] sm:$0xff]
  %v15 = vld [vmem:[%s0 + $0x8] sm:$0xff]
  %v16 = vld [vmem:[%s0 + $0x10] sm:$0xff]
  %v17 = vld [vmem:[%s0 + $0x18] sm:$0xff]
  %v18 = vld [vmem:[%s0 + $0x20] sm:$0xff]
  %v19 = vld [vmem:[%s0 + $0x28] sm:$0xff]
  %v20 = vld [vmem:[%s0 + $0x30] sm:$0xff]
  %v21 = vld [vmem:[%s0 + $0x38] sm:$0xff]
  %v22 = vld [vmem:[%s0 + $0x40] sm:$0xff]
  %v23 = vld [vmem:[%s0 + $0x48] sm:$0xff]
  %v24 = vld [vmem:[%s0 + $0x50] sm:$0xff]
  %v25 = vld [vmem:[%s0 + $0x58] sm:$0xff]
  %v26 = vld [vmem:[%s0 + $0x60] sm:$0xff]
  %v27 = vld [vmem:[%s0 + $0x68] sm:$0xff]
  %v28 = vld [vmem:[%s0 + $0x70] sm:$0xff]
  %v29 = vld [vmem:[%s0 + $0x78] sm:$0xff]
  %v30 = vld [vmem:[%s0 + $0x80] sm:$0xff]
  %v31 = vld [vmem:[%s0 + $0x88] sm:$0xff]
  %v32 = vld [vmem:[%s0 + $0x90] sm:$0xff]
  %v33 = vld [vmem:[%s0 + $0x98] sm:$0xff]
  %v34 = vld [vmem:[%s0 + $0xa0] sm:$0xff]
  %v35 = vld [vmem:[%s0 + $0xa8] sm:$0xff]
  %v36 = vld [vmem:[%s0 + $0xb0] sm:$0xff]
  %v37 = vld [vmem:[%s0 + $0xb8] sm:$0xff]
  %v38 = vld [vmem:[%s0 + $0xc0] sm:$0xff]
  %v39 = vld [vmem:[%s0 + $0xc8] sm:$0xff]
  %v40 = vld [vmem:[%s0 + $0xd0] sm:$0xff]
  %v41 = vld [vmem:[%s0 + $0xd8] sm:$0xff]
  %v42 = vld [vmem:[%s0 + $0xe0] sm:$0xff]
  %v43 = vld [vmem:[%s0 + $0xe8] sm:$0xff]
  %v44 = vld [vmem:[%s0 + $0xf0] sm:$0xff]
  %v45 = vld [vmem:[%s0 + $0xf8] sm:$0xff]
  %v46 = vld [vmem:[%s1] sm:$0xff]
  %v47 = vld [vmem:[%s1 + $0x8] sm:$0xff]
  %v48 = vld [vmem:[%s1 + $0x10] sm:$0xff]
  %v49 = vld [vmem:[%s1 + $0x18] sm:$0xff]
  %v50 = vld [vmem:[%s2] sm:$0x1]
  %v52 = vlaneseq
  %v53 = vshrl.u32 %v52, 7
  %v54 = vsub.s32 0, %v53
  %v55 = vrot.slane %v50, %v54
  %vm57 = vcmask 261120
  %v59 = vsel %vm57, %v14, 0
  %v62 = vsel %vm57, %v15, 0
  %v65 = vsel %vm57, %v16, 0
  %v68 = vsel %vm57, %v17, 0
  %v71 = vsel %vm57, %v18, 0
  %v74 = vsel %vm57, %v19, 0
  %v77 = vsel %vm57, %v20, 0
  %v80 = vsel %vm57, %v21, 0
  %v83 = vsel %vm57, %v22, 0
  %v86 = vsel %vm57, %v23, 0
  %v89 = vsel %vm57, %v24, 0
  %v92 = vsel %vm57, %v25, 0
  %v95 = vsel %vm57, %v26, 0
  %v98 = vsel %vm57, %v27, 0
  %v101 = vsel %vm57, %v28, 0
  %v104 = vsel %vm57, %v29, 0
  %v107 = vsel %vm57, %v30, 0
  %v110 = vsel %vm57, %v31, 0
  %v113 = vsel %vm57, %v32, 0
  %v116 = vsel %vm57, %v33, 0
  %v119 = vsel %vm57, %v34, 0
  %v122 = vsel %vm57, %v35, 0
  %v125 = vsel %vm57, %v36, 0
  %v128 = vsel %vm57, %v37, 0
  %v131 = vsel %vm57, %v38, 0
  %v134 = vsel %vm57, %v39, 0
  %v137 = vsel %vm57, %v40, 0
  %v140 = vsel %vm57, %v41, 0
  %v143 = vsel %vm57, %v42, 0
  %v146 = vsel %vm57, %v43, 0
  %v149 = vsel %vm57, %v44, 0
  %v152 = vsel %vm57, %v45, 0
  %154 = vmatprep.subr.mxu0 0.0
  %155 = vmatpush1.msra.mxu0 %v46
  %156 = vmatprep.subr.mxu0 0.0
  %157 = vmatpush1.msra.mxu0 %v47
  %158 = vmatprep.subr.mxu0 0.0
  %159 = vmatpush1.msra.mxu0 %v48
  %160 = vmatprep.subr.mxu0 0.0
  %161 = vmatpush1.msra.mxu0 %v49
  %162 = vmatprep.subr.mxu0 0.0
  %163 = vmatpush1.msra.mxu0 0.0
  %164 = vmatprep.subr.mxu0 0.0
  %165 = vmatpush1.msra.mxu0 0.0
  %166 = vmatprep.subr.mxu0 0.0
  %167 = vmatpush1.msra.mxu0 0.0
  %168 = vmatprep.subr.mxu0 0.0
  %169 = vmatpush1.msra.mxu0 0.0
  %170 = vmatprep.subr.mxu0 0.0
  %171 = vmatpush1.msra.mxu0 0.0
  %172 = vmatprep.subr.mxu0 0.0
  %173 = vmatpush1.msra.mxu0 0.0
  %174 = vmatprep.subr.mxu0 0.0
  %175 = vmatpush1.msra.mxu0 0.0
  %176 = vmatprep.subr.mxu0 0.0
  %177 = vmatpush1.msra.mxu0 0.0
  %178 = vmatprep.subr.mxu0 0.0
  %179 = vmatpush1.msra.mxu0 0.0
  %180 = vmatprep.subr.mxu0 0.0
  %181 = vmatpush1.msra.mxu0 0.0
  %182 = vmatprep.subr.mxu0 0.0
  %183 = vmatpush1.msra.mxu0 0.0
  %184 = vmatprep.subr.mxu0 0.0
  %185 = vmatpush1.msra.mxu0 0.0
  %186 = vmatprep.subr.mxu0 0.0
  %187 = vmatpush1.msra.mxu0 0.0
  %188 = vmatprep.subr.mxu0 0.0
  %189 = vmatpush1.msra.mxu0 0.0
  %190 = vmatprep.subr.mxu0 0.0
  %191 = vmatpush1.msra.mxu0 0.0
  %192 = vmatprep.subr.mxu0 0.0
  %193 = vmatpush1.msra.mxu0 0.0
  %194 = vmatprep.subr.mxu0 0.0
  %195 = vmatpush1.msra.mxu0 0.0
  %196 = vmatprep.subr.mxu0 0.0
  %197 = vmatpush1.msra.mxu0 0.0
  %198 = vmatprep.subr.mxu0 0.0
  %199 = vmatpush1.msra.mxu0 0.0
  %200 = vmatprep.subr.mxu0 0.0
  %201 = vmatpush1.msra.mxu0 0.0
  %202 = vmatprep.subr.mxu0 0.0
  %203 = vmatpush1.msra.mxu0 0.0
  %204 = vmatprep.subr.mxu0 0.0
  %205 = vmatpush1.msra.mxu0 0.0
  %206 = vmatprep.subr.mxu0 0.0
  %207 = vmatpush1.msra.mxu0 0.0
  %208 = vmatprep.subr.mxu0 0.0
  %209 = vmatpush1.msra.mxu0 0.0
  %210 = vmatprep.subr.mxu0 0.0
  %211 = vmatpush1.msra.mxu0 0.0
  %212 = vmatprep.subr.mxu0 0.0
  %213 = vmatpush1.msra.mxu0 0.0
  %214 = vmatprep.subr.mxu0 0.0
  %215 = vmatpush1.msra.mxu0 0.0
  %216 = vmatprep.subr.mxu0 0.0
  %217 = vmatpush1.msra.mxu0 0.0
  %218 = vmatprep.mubr.f32.mxu0 0.0
  %219 = vmatmul.mubr.f32.gmra.mrb[0].mxu0 %v59
  %v220 = vpop.f32.mrb[0].mxu0
  %v221 = vadd.f32 %v55, %v220
  %v222 = vpop.f32.mrb[0].mxu0
  %223 = vmatprep.mubr.f32.mxu0 0.0
  %224 = vmatmul.mubr.f32.gmra.mrb[0].mxu0 %v62
  %v225 = vpop.f32.mrb[0].mxu0
  %v226 = vadd.f32 %v55, %v225
  %v227 = vpop.f32.mrb[0].mxu0
  %228 = vmatprep.mubr.f32.mxu0 0.0
  %229 = vmatmul.mubr.f32.gmra.mrb[0].mxu0 %v65
  %v230 = vpop.f32.mrb[0].mxu0
  %v231 = vadd.f32 %v55, %v230
  %v232 = vpop.f32.mrb[0].mxu0
  %233 = vmatprep.mubr.f32.mxu0 0.0
  %234 = vmatmul.mubr.f32.gmra.mrb[0].mxu0 %v68
  %v235 = vpop.f32.mrb[0].mxu0
  %v236 = vadd.f32 %v55, %v235
  %v237 = vpop.f32.mrb[0].mxu0
  %238 = vmatprep.mubr.f32.mxu0 0.0
  %239 = vmatmul.mubr.f32.gmra.mrb[0].mxu0 %v71
  %v240 = vpop.f32.mrb[0].mxu0
  %v241 = vadd.f32 %v55, %v240
  %v242 = vpop.f32.mrb[0].mxu0
  %243 = vmatprep.mubr.f32.mxu0 0.0
  %244 = vmatmul.mubr.f32.gmra.mrb[0].mxu0 %v74
  %v245 = vpop.f32.mrb[0].mxu0
  %v246 = vadd.f32 %v55, %v245
  %v247 = vpop.f32.mrb[0].mxu0
  %248 = vmatprep.mubr.f32.mxu0 0.0
  %249 = vmatmul.mubr.f32.gmra.mrb[0].mxu0 %v77
  %v250 = vpop.f32.mrb[0].mxu0
  %v251 = vadd.f32 %v55, %v250
  %v252 = vpop.f32.mrb[0].mxu0
  %253 = vmatprep.mubr.f32.mxu0 0.0
  %254 = vmatmul.mubr.f32.gmra.mrb[0].mxu0 %v80
  %v255 = vpop.f32.mrb[0].mxu0
  %v256 = vadd.f32 %v55, %v255
  %v257 = vpop.f32.mrb[0].mxu0
  %258 = vmatprep.mubr.f32.mxu0 0.0
  %259 = vmatmul.mubr.f32.gmra.mrb[0].mxu0 %v83
  %v260 = vpop.f32.mrb[0].mxu0
  %v261 = vadd.f32 %v55, %v260
  %v262 = vpop.f32.mrb[0].mxu0
  %263 = vmatprep.mubr.f32.mxu0 0.0
  %264 = vmatmul.mubr.f32.gmra.mrb[0].mxu0 %v86
  %v265 = vpop.f32.mrb[0].mxu0
  %v266 = vadd.f32 %v55, %v265
  %v267 = vpop.f32.mrb[0].mxu0
  %268 = vmatprep.mubr.f32.mxu0 0.0
  %269 = vmatmul.mubr.f32.gmra.mrb[0].mxu0 %v89
  %v270 = vpop.f32.mrb[0].mxu0
  %v271 = vadd.f32 %v55, %v270
  %v272 = vpop.f32.mrb[0].mxu0
  %273 = vmatprep.mubr.f32.mxu0 0.0
  %274 = vmatmul.mubr.f32.gmra.mrb[0].mxu0 %v92
  %v275 = vpop.f32.mrb[0].mxu0
  %v276 = vadd.f32 %v55, %v275
  %v277 = vpop.f32.mrb[0].mxu0
  %278 = vmatprep.mubr.f32.mxu0 0.0
  %279 = vmatmul.mubr.f32.gmra.mrb[0].mxu0 %v95
  %v280 = vpop.f32.mrb[0].mxu0
  %v281 = vadd.f32 %v55, %v280
  %v282 = vpop.f32.mrb[0].mxu0
  %283 = vmatprep.mubr.f32.mxu0 0.0
  %284 = vmatmul.mubr.f32.gmra.mrb[0].mxu0 %v98
  %v285 = vpop.f32.mrb[0].mxu0
  %v286 = vadd.f32 %v55, %v285
  %v287 = vpop.f32.mrb[0].mxu0
  %288 = vmatprep.mubr.f32.mxu0 0.0
  %289 = vmatmul.mubr.f32.gmra.mrb[0].mxu0 %v101
  %v290 = vpop.f32.mrb[0].mxu0
  %v291 = vadd.f32 %v55, %v290
  %v292 = vpop.f32.mrb[0].mxu0
  %293 = vmatprep.mubr.f32.mxu0 0.0
  %294 = vmatmul.mubr.f32.gmra.mrb[0].mxu0 %v104
  %v295 = vpop.f32.mrb[0].mxu0
  %v296 = vadd.f32 %v55, %v295
  %v297 = vpop.f32.mrb[0].mxu0
  %298 = vmatprep.mubr.f32.mxu0 0.0
  %299 = vmatmul.mubr.f32.gmra.mrb[0].mxu0 %v107
  %v300 = vpop.f32.mrb[0].mxu0
  %v301 = vadd.f32 %v55, %v300
  %v302 = vpop.f32.mrb[0].mxu0
  %303 = vmatprep.mubr.f32.mxu0 0.0
  %304 = vmatmul.mubr.f32.gmra.mrb[0].mxu0 %v110
  %v305 = vpop.f32.mrb[0].mxu0
  %v306 = vadd.f32 %v55, %v305
  %v307 = vpop.f32.mrb[0].mxu0
  %308 = vmatprep.mubr.f32.mxu0 0.0
  %309 = vmatmul.mubr.f32.gmra.mrb[0].mxu0 %v113
  %v310 = vpop.f32.mrb[0].mxu0
  %v311 = vadd.f32 %v55, %v310
  %v312 = vpop.f32.mrb[0].mxu0
  %313 = vmatprep.mubr.f32.mxu0 0.0
  %314 = vmatmul.mubr.f32.gmra.mrb[0].mxu0 %v116
  %v315 = vpop.f32.mrb[0].mxu0
  %v316 = vadd.f32 %v55, %v315
  %v317 = vpop.f32.mrb[0].mxu0
  %318 = vmatprep.mubr.f32.mxu0 0.0
  %319 = vmatmul.mubr.f32.gmra.mrb[0].mxu0 %v119
  %v320 = vpop.f32.mrb[0].mxu0
  %v321 = vadd.f32 %v55, %v320
  %v322 = vpop.f32.mrb[0].mxu0
  %323 = vmatprep.mubr.f32.mxu0 0.0
  %324 = vmatmul.mubr.f32.gmra.mrb[0].mxu0 %v122
  %v325 = vpop.f32.mrb[0].mxu0
  %v326 = vadd.f32 %v55, %v325
  %v327 = vpop.f32.mrb[0].mxu0
  %328 = vmatprep.mubr.f32.mxu0 0.0
  %329 = vmatmul.mubr.f32.gmra.mrb[0].mxu0 %v125
  %v330 = vpop.f32.mrb[0].mxu0
  %v331 = vadd.f32 %v55, %v330
  %v332 = vpop.f32.mrb[0].mxu0
  %333 = vmatprep.mubr.f32.mxu0 0.0
  %334 = vmatmul.mubr.f32.gmra.mrb[0].mxu0 %v128
  %v335 = vpop.f32.mrb[0].mxu0
  %v336 = vadd.f32 %v55, %v335
  %v337 = vpop.f32.mrb[0].mxu0
  %338 = vmatprep.mubr.f32.mxu0 0.0
  %339 = vmatmul.mubr.f32.gmra.mrb[0].mxu0 %v131
  %v340 = vpop.f32.mrb[0].mxu0
  %v341 = vadd.f32 %v55, %v340
  %v342 = vpop.f32.mrb[0].mxu0
  %343 = vmatprep.mubr.f32.mxu0 0.0
  %344 = vmatmul.mubr.f32.gmra.mrb[0].mxu0 %v134
  %v345 = vpop.f32.mrb[0].mxu0
  %v346 = vadd.f32 %v55, %v345
  %v347 = vpop.f32.mrb[0].mxu0
  %348 = vmatprep.mubr.f32.mxu0 0.0
  %349 = vmatmul.mubr.f32.gmra.mrb[0].mxu0 %v137
  %v350 = vpop.f32.mrb[0].mxu0
  %v351 = vadd.f32 %v55, %v350
  %v352 = vpop.f32.mrb[0].mxu0
  %353 = vmatprep.mubr.f32.mxu0 0.0
  %354 = vmatmul.mubr.f32.gmra.mrb[0].mxu0 %v140
  %v355 = vpop.f32.mrb[0].mxu0
  %v356 = vadd.f32 %v55, %v355
  %v357 = vpop.f32.mrb[0].mxu0
  %358 = vmatprep.mubr.f32.mxu0 0.0
  %359 = vmatmul.mubr.f32.gmra.mrb[0].mxu0 %v143
  %v360 = vpop.f32.mrb[0].mxu0
  %v361 = vadd.f32 %v55, %v360
  %v362 = vpop.f32.mrb[0].mxu0
  %363 = vmatprep.mubr.f32.mxu0 0.0
  %364 = vmatmul.mubr.f32.gmra.mrb[0].mxu0 %v146
  %v365 = vpop.f32.mrb[0].mxu0
  %v366 = vadd.f32 %v55, %v365
  %v367 = vpop.f32.mrb[0].mxu0
  %368 = vmatprep.mubr.f32.mxu0 0.0
  %369 = vmatmul.mubr.f32.gmra.mrb[0].mxu0 %v149
  %v370 = vpop.f32.mrb[0].mxu0
  %v371 = vadd.f32 %v55, %v370
  %v372 = vpop.f32.mrb[0].mxu0
  %373 = vmatprep.mubr.f32.mxu0 0.0
  %374 = vmatmul.mubr.f32.gmra.mrb[0].mxu0 %v152
  %v375 = vpop.f32.mrb[0].mxu0
  %v376 = vadd.f32 %v55, %v375
  %v377 = vpop.f32.mrb[0].mxu0
  %378 = vdwg.mxu0
  %v379 = vlaneseq
  %v380 = vand.u32 %v379, 127
  %vm381 = vcmp.lt.s32.totalorder %v380, 16
  %v382 = vmul.f32 %v221, %v221
  %v383 = vmul.f32 %v226, %v226
  %v384 = vmul.f32 %v231, %v231
  %v385 = vmul.f32 %v236, %v236
  %v386 = vmul.f32 %v241, %v241
  %v387 = vmul.f32 %v246, %v246
  %v388 = vmul.f32 %v251, %v251
  %v389 = vmul.f32 %v256, %v256
  %v390 = vmul.f32 %v261, %v261
  %v391 = vmul.f32 %v266, %v266
  %v392 = vmul.f32 %v271, %v271
  %v393 = vmul.f32 %v276, %v276
  %v394 = vmul.f32 %v281, %v281
  %v395 = vmul.f32 %v286, %v286
  %v396 = vmul.f32 %v291, %v291
  %v397 = vmul.f32 %v296, %v296
  %v398 = vmul.f32 %v301, %v301
  %v399 = vmul.f32 %v306, %v306
  %v400 = vmul.f32 %v311, %v311
  %v401 = vmul.f32 %v316, %v316
  %v402 = vmul.f32 %v321, %v321
  %v403 = vmul.f32 %v326, %v326
  %v404 = vmul.f32 %v331, %v331
  %v405 = vmul.f32 %v336, %v336
  %v406 = vmul.f32 %v341, %v341
  %v407 = vmul.f32 %v346, %v346
  %v408 = vmul.f32 %v351, %v351
  %v409 = vmul.f32 %v356, %v356
  %v410 = vmul.f32 %v361, %v361
  %v411 = vmul.f32 %v366, %v366
  %v412 = vmul.f32 %v371, %v371
  %v413 = vmul.f32 %v376, %v376
  %v414 = vsel %vm381, %v382, 0.0
  %v415 = vsel %vm381, %v383, 0.0
  %v416 = vsel %vm381, %v384, 0.0
  %v417 = vsel %vm381, %v385, 0.0
  %v418 = vsel %vm381, %v386, 0.0
  %v419 = vsel %vm381, %v387, 0.0
  %v420 = vsel %vm381, %v388, 0.0
  %v421 = vsel %vm381, %v389, 0.0
  %v422 = vsel %vm381, %v390, 0.0
  %v423 = vsel %vm381, %v391, 0.0
  %v424 = vsel %vm381, %v392, 0.0
  %v425 = vsel %vm381, %v393, 0.0
  %v426 = vsel %vm381, %v394, 0.0
  %v427 = vsel %vm381, %v395, 0.0
  %v428 = vsel %vm381, %v396, 0.0
  %v429 = vsel %vm381, %v397, 0.0
  %v430 = vsel %vm381, %v398, 0.0
  %v431 = vsel %vm381, %v399, 0.0
  %v432 = vsel %vm381, %v400, 0.0
  %v433 = vsel %vm381, %v401, 0.0
  %v434 = vsel %vm381, %v402, 0.0
  %v435 = vsel %vm381, %v403, 0.0
  %v436 = vsel %vm381, %v404, 0.0
  %v437 = vsel %vm381, %v405, 0.0
  %v438 = vsel %vm381, %v406, 0.0
  %v439 = vsel %vm381, %v407, 0.0
  %v440 = vsel %vm381, %v408, 0.0
  %v441 = vsel %vm381, %v409, 0.0
  %v442 = vsel %vm381, %v410, 0.0
  %v443 = vsel %vm381, %v411, 0.0
  %v444 = vsel %vm381, %v412, 0.0
  %v445 = vsel %vm381, %v413, 0.0
  %446 = vadd.xlane.f32.xlu0 %v414
  %v447 = vpop.xlane.xlu0 %446
  %448 = vadd.xlane.f32.xlu0 %v415
  %v449 = vpop.xlane.xlu0 %448
  %450 = vadd.xlane.f32.xlu0 %v416
  %v451 = vpop.xlane.xlu0 %450
  %452 = vadd.xlane.f32.xlu0 %v417
  %v453 = vpop.xlane.xlu0 %452
  %454 = vadd.xlane.f32.xlu0 %v418
  %v455 = vpop.xlane.xlu0 %454
  %456 = vadd.xlane.f32.xlu0 %v419
  %v457 = vpop.xlane.xlu0 %456
  %458 = vadd.xlane.f32.xlu0 %v420
  %v459 = vpop.xlane.xlu0 %458
  %460 = vadd.xlane.f32.xlu0 %v421
  %v461 = vpop.xlane.xlu0 %460
  %462 = vadd.xlane.f32.xlu0 %v422
  %v463 = vpop.xlane.xlu0 %462
  %464 = vadd.xlane.f32.xlu0 %v423
  %v465 = vpop.xlane.xlu0 %464
  %466 = vadd.xlane.f32.xlu0 %v424
  %v467 = vpop.xlane.xlu0 %466
  %468 = vadd.xlane.f32.xlu0 %v425
  %v469 = vpop.xlane.xlu0 %468
  %470 = vadd.xlane.f32.xlu0 %v426
  %v471 = vpop.xlane.xlu0 %470
  %472 = vadd.xlane.f32.xlu0 %v427
  %v473 = vpop.xlane.xlu0 %472
  %474 = vadd.xlane.f32.xlu0 %v428
  %v475 = vpop.xlane.xlu0 %474
  %476 = vadd.xlane.f32.xlu0 %v429
  %v477 = vpop.xlane.xlu0 %476
  %478 = vadd.xlane.f32.xlu0 %v430
  %v479 = vpop.xlane.xlu0 %478
  %480 = vadd.xlane.f32.xlu0 %v431
  %v481 = vpop.xlane.xlu0 %480
  %482 = vadd.xlane.f32.xlu0 %v432
  %v483 = vpop.xlane.xlu0 %482
  %484 = vadd.xlane.f32.xlu0 %v433
  %v485 = vpop.xlane.xlu0 %484
  %486 = vadd.xlane.f32.xlu0 %v434
  %v487 = vpop.xlane.xlu0 %486
  %488 = vadd.xlane.f32.xlu0 %v435
  %v489 = vpop.xlane.xlu0 %488
  %490 = vadd.xlane.f32.xlu0 %v436
  %v491 = vpop.xlane.xlu0 %490
  %492 = vadd.xlane.f32.xlu0 %v437
  %v493 = vpop.xlane.xlu0 %492
  %494 = vadd.xlane.f32.xlu0 %v438
  %v495 = vpop.xlane.xlu0 %494
  %496 = vadd.xlane.f32.xlu0 %v439
  %v497 = vpop.xlane.xlu0 %496
  %498 = vadd.xlane.f32.xlu0 %v440
  %v499 = vpop.xlane.xlu0 %498
  %500 = vadd.xlane.f32.xlu0 %v441
  %v501 = vpop.xlane.xlu0 %500
  %502 = vadd.xlane.f32.xlu0 %v442
  %v503 = vpop.xlane.xlu0 %502
  %504 = vadd.xlane.f32.xlu0 %v443
  %v505 = vpop.xlane.xlu0 %504
  %506 = vadd.xlane.f32.xlu0 %v444
  %v507 = vpop.xlane.xlu0 %506
  %508 = vadd.xlane.f32.xlu0 %v445
  %v509 = vpop.xlane.xlu0 %508
  %v510 = vmax.f32 %v447, 1e-24
  %v511 = vmax.f32 %v449, 1e-24
  %v512 = vmax.f32 %v451, 1e-24
  %v513 = vmax.f32 %v453, 1e-24
  %v514 = vmax.f32 %v455, 1e-24
  %v515 = vmax.f32 %v457, 1e-24
  %v516 = vmax.f32 %v459, 1e-24
  %v517 = vmax.f32 %v461, 1e-24
  %v518 = vmax.f32 %v463, 1e-24
  %v519 = vmax.f32 %v465, 1e-24
  %v520 = vmax.f32 %v467, 1e-24
  %v521 = vmax.f32 %v469, 1e-24
  %v522 = vmax.f32 %v471, 1e-24
  %v523 = vmax.f32 %v473, 1e-24
  %v524 = vmax.f32 %v475, 1e-24
  %v525 = vmax.f32 %v477, 1e-24
  %v526 = vmax.f32 %v479, 1e-24
  %v527 = vmax.f32 %v481, 1e-24
  %v528 = vmax.f32 %v483, 1e-24
  %v529 = vmax.f32 %v485, 1e-24
  %v530 = vmax.f32 %v487, 1e-24
  %v531 = vmax.f32 %v489, 1e-24
  %v532 = vmax.f32 %v491, 1e-24
  %v533 = vmax.f32 %v493, 1e-24
  %v534 = vmax.f32 %v495, 1e-24
  %v535 = vmax.f32 %v497, 1e-24
  %v536 = vmax.f32 %v499, 1e-24
  %v537 = vmax.f32 %v501, 1e-24
  %v538 = vmax.f32 %v503, 1e-24
  %v539 = vmax.f32 %v505, 1e-24
  %v540 = vmax.f32 %v507, 1e-24
  %v541 = vmax.f32 %v509, 1e-24
  %v542 = vrsqrt.pop %v510
  %v543 = vrsqrt.pop %v511
  %v544 = vrsqrt.pop %v512
  %v545 = vrsqrt.pop %v513
  %v546 = vrsqrt.pop %v514
  %v547 = vrsqrt.pop %v515
  %v548 = vrsqrt.pop %v516
  %v549 = vrsqrt.pop %v517
  %v550 = vrsqrt.pop %v518
  %v551 = vrsqrt.pop %v519
  %v552 = vrsqrt.pop %v520
  %v553 = vrsqrt.pop %v521
  %v554 = vrsqrt.pop %v522
  %v555 = vrsqrt.pop %v523
  %v556 = vrsqrt.pop %v524
  %v557 = vrsqrt.pop %v525
  %v558 = vrsqrt.pop %v526
  %v559 = vrsqrt.pop %v527
  %v560 = vrsqrt.pop %v528
  %v561 = vrsqrt.pop %v529
  %v562 = vrsqrt.pop %v530
  %v563 = vrsqrt.pop %v531
  %v564 = vrsqrt.pop %v532
  %v565 = vrsqrt.pop %v533
  %v566 = vrsqrt.pop %v534
  %v567 = vrsqrt.pop %v535
  %v568 = vrsqrt.pop %v536
  %v569 = vrsqrt.pop %v537
  %v570 = vrsqrt.pop %v538
  %v571 = vrsqrt.pop %v539
  %v572 = vrsqrt.pop %v540
  %v573 = vrsqrt.pop %v541
  %v574 = vmul.f32 %v542, 0.4
  %v575 = vmul.f32 %v543, 0.4
  %v576 = vmul.f32 %v544, 0.4
  %v577 = vmul.f32 %v545, 0.4
  %v578 = vmul.f32 %v546, 0.4
  %v579 = vmul.f32 %v547, 0.4
  %v580 = vmul.f32 %v548, 0.4
  %v581 = vmul.f32 %v549, 0.4
  %v582 = vmul.f32 %v550, 0.4
  %v583 = vmul.f32 %v551, 0.4
  %v584 = vmul.f32 %v552, 0.4
  %v585 = vmul.f32 %v553, 0.4
  %v586 = vmul.f32 %v554, 0.4
  %v587 = vmul.f32 %v555, 0.4
  %v588 = vmul.f32 %v556, 0.4
  %v589 = vmul.f32 %v557, 0.4
  %v590 = vmul.f32 %v558, 0.4
  %v591 = vmul.f32 %v559, 0.4
  %v592 = vmul.f32 %v560, 0.4
  %v593 = vmul.f32 %v561, 0.4
  %v594 = vmul.f32 %v562, 0.4
  %v595 = vmul.f32 %v563, 0.4
  %v596 = vmul.f32 %v564, 0.4
  %v597 = vmul.f32 %v565, 0.4
  %v598 = vmul.f32 %v566, 0.4
  %v599 = vmul.f32 %v567, 0.4
  %v600 = vmul.f32 %v568, 0.4
  %v601 = vmul.f32 %v569, 0.4
  %v602 = vmul.f32 %v570, 0.4
  %v603 = vmul.f32 %v571, 0.4
  %v604 = vmul.f32 %v572, 0.4
  %v605 = vmul.f32 %v573, 0.4
  %v606 = vmul.f32 %v221, %v574
  %v607 = vmul.f32 %v226, %v575
  %v608 = vmul.f32 %v231, %v576
  %v609 = vmul.f32 %v236, %v577
  %v610 = vmul.f32 %v241, %v578
  %v611 = vmul.f32 %v246, %v579
  %v612 = vmul.f32 %v251, %v580
  %v613 = vmul.f32 %v256, %v581
  %v614 = vmul.f32 %v261, %v582
  %v615 = vmul.f32 %v266, %v583
  %v616 = vmul.f32 %v271, %v584
  %v617 = vmul.f32 %v276, %v585
  %v618 = vmul.f32 %v281, %v586
  %v619 = vmul.f32 %v286, %v587
  %v620 = vmul.f32 %v291, %v588
  %v621 = vmul.f32 %v296, %v589
  %v622 = vmul.f32 %v301, %v590
  %v623 = vmul.f32 %v306, %v591
  %v624 = vmul.f32 %v311, %v592
  %v625 = vmul.f32 %v316, %v593
  %v626 = vmul.f32 %v321, %v594
  %v627 = vmul.f32 %v326, %v595
  %v628 = vmul.f32 %v331, %v596
  %v629 = vmul.f32 %v336, %v597
  %v630 = vmul.f32 %v341, %v598
  %v631 = vmul.f32 %v346, %v599
  %v632 = vmul.f32 %v351, %v600
  %v633 = vmul.f32 %v356, %v601
  %v634 = vmul.f32 %v361, %v602
  %v635 = vmul.f32 %v366, %v603
  %v636 = vmul.f32 %v371, %v604
  %v637 = vmul.f32 %v376, %v605
  %v638 = vsel %vm381, %v606, %v221
  %v639 = vsel %vm381, %v607, %v226
  %v640 = vsel %vm381, %v608, %v231
  %v641 = vsel %vm381, %v609, %v236
  %v642 = vsel %vm381, %v610, %v241
  %v643 = vsel %vm381, %v611, %v246
  %v644 = vsel %vm381, %v612, %v251
  %v645 = vsel %vm381, %v613, %v256
  %v646 = vsel %vm381, %v614, %v261
  %v647 = vsel %vm381, %v615, %v266
  %v648 = vsel %vm381, %v616, %v271
  %v649 = vsel %vm381, %v617, %v276
  %v650 = vsel %vm381, %v618, %v281
  %v651 = vsel %vm381, %v619, %v286
  %v652 = vsel %vm381, %v620, %v291
  %v653 = vsel %vm381, %v621, %v296
  %v654 = vsel %vm381, %v622, %v301
  %v655 = vsel %vm381, %v623, %v306
  %v656 = vsel %vm381, %v624, %v311
  %v657 = vsel %vm381, %v625, %v316
  %v658 = vsel %vm381, %v626, %v321
  %v659 = vsel %vm381, %v627, %v326
  %v660 = vsel %vm381, %v628, %v331
  %v661 = vsel %vm381, %v629, %v336
  %v662 = vsel %vm381, %v630, %v341
  %v663 = vsel %vm381, %v631, %v346
  %v664 = vsel %vm381, %v632, %v351
  %v665 = vsel %vm381, %v633, %v356
  %v666 = vsel %vm381, %v634, %v361
  %v667 = vsel %vm381, %v635, %v366
  %v668 = vsel %vm381, %v636, %v371
  %v669 = vsel %vm381, %v637, %v376
  %670 = vst [vmem:[%s3] sm:$0xff] %v638
  %671 = vst [vmem:[%s3 + $0x8] sm:$0xff] %v639
  %672 = vst [vmem:[%s3 + $0x10] sm:$0xff] %v640
  %673 = vst [vmem:[%s3 + $0x18] sm:$0xff] %v641
  %674 = vst [vmem:[%s3 + $0x20] sm:$0xff] %v642
  %675 = vst [vmem:[%s3 + $0x28] sm:$0xff] %v643
  %676 = vst [vmem:[%s3 + $0x30] sm:$0xff] %v644
  %677 = vst [vmem:[%s3 + $0x38] sm:$0xff] %v645
  %678 = vst [vmem:[%s3 + $0x40] sm:$0xff] %v646
  %679 = vst [vmem:[%s3 + $0x48] sm:$0xff] %v647
  %680 = vst [vmem:[%s3 + $0x50] sm:$0xff] %v648
  %681 = vst [vmem:[%s3 + $0x58] sm:$0xff] %v649
  %682 = vst [vmem:[%s3 + $0x60] sm:$0xff] %v650
  %683 = vst [vmem:[%s3 + $0x68] sm:$0xff] %v651
  %684 = vst [vmem:[%s3 + $0x70] sm:$0xff] %v652
  %685 = vst [vmem:[%s3 + $0x78] sm:$0xff] %v653
  %686 = vst [vmem:[%s3 + $0x80] sm:$0xff] %v654
  %687 = vst [vmem:[%s3 + $0x88] sm:$0xff] %v655
  %688 = vst [vmem:[%s3 + $0x90] sm:$0xff] %v656
  %689 = vst [vmem:[%s3 + $0x98] sm:$0xff] %v657
  %690 = vst [vmem:[%s3 + $0xa0] sm:$0xff] %v658
  %691 = vst [vmem:[%s3 + $0xa8] sm:$0xff] %v659
  %692 = vst [vmem:[%s3 + $0xb0] sm:$0xff] %v660
  %693 = vst [vmem:[%s3 + $0xb8] sm:$0xff] %v661
  %694 = vst [vmem:[%s3 + $0xc0] sm:$0xff] %v662
  %695 = vst [vmem:[%s3 + $0xc8] sm:$0xff] %v663
  %696 = vst [vmem:[%s3 + $0xd0] sm:$0xff] %v664
  %697 = vst [vmem:[%s3 + $0xd8] sm:$0xff] %v665
  %698 = vst [vmem:[%s3 + $0xe0] sm:$0xff] %v666
  %699 = vst [vmem:[%s3 + $0xe8] sm:$0xff] %v667
  %700 = vst [vmem:[%s3 + $0xf0] sm:$0xff] %v668
  %701 = vst [vmem:[%s3 + $0xf8] sm:$0xff] %v669
  // Predicated region
  $region14: #{vgnae_encoder.2} parent=0 // pred_check
    _
  $region15: #{vgnae_encoder.2} parent=0 // pred_check_branch
    %703 = sbr.rel (0) target = $region17
  $region16: #{vgnae_encoder.2} parent=0 // pred_region
    _
  $region17: #{vgnae_encoder.2} parent=0 // pred_fallthru
    _
  // Predicated region
  $region18: #{vgnae_encoder.2} parent=0 // pred_check
    _
  $region19: #{vgnae_encoder.2} parent=0 // pred_check_branch
    %705 = sbr.rel (0) target = $region21
  $region20: #{vgnae_encoder.2} parent=0 // pred_region
    _
  $region21: #{vgnae_encoder.2} parent=0 // pred_fallthru
    _

// kernel: vgnae_encoder.3
$region0: #{vgnae_encoder.3}
  #allocation0 [shape = 'u32[]', space=smem, size = 0x4, offset = 0x4, fixed_abs, tag = 'smem constant byte address 0x4 - core index']
  #allocation1 [shape = 'u32[144,128]{1,0:T(1,128)}', space=vmem, size = 0x12000, scoped, tag = 'internal scratch']
  #allocation2 [shape = 'f32[256,128]{1,0:T(8,128)}', space=vmem, size = 0x20000, scoped, tag = 'scratch operand']
  %s0 = inlined_call_operand.vmem [shape: f32[256,256], index: 0, kind: input, shape index: {}]
  %s1 = inlined_call_operand.vmem [shape: f32[256,128], index: 1, kind: input, shape index: {}]
  %s2 = inlined_call_operand.vmem [shape: f32[256,128], index: 2, kind: output, shape index: {}]
  %s3 = sld [smem:[#allocation0]]
  $region26: #{vgnae_encoder.3} parent=0
    _
  %s5 = ssub.s32 1, %s3
  %s6 = scalar_select 0, %s5, %s3
  // Predicated region
  $region2: #{vgnae_encoder.3} parent=0 // pred_check
    _
  $region3: #{vgnae_encoder.3} parent=0 // pred_check_branch
    %8 = sbr.rel (0) target = $region5
  $region4: #{vgnae_encoder.3} parent=0 // pred_region
    _
  $region5: #{vgnae_encoder.3} parent=0 // pred_fallthru
    _
  // Predicated region
  $region6: #{vgnae_encoder.3} parent=0 // pred_check
    _
  $region7: #{vgnae_encoder.3} parent=0 // pred_check_branch
    %10 = sbr.rel (0) target = $region9
  $region8: #{vgnae_encoder.3} parent=0 // pred_region
    _
  $region9: #{vgnae_encoder.3} parent=0 // pred_fallthru
    _
  %p11 = scmp.eq.s32.totalorder 0, 0
  // Predicated region
  $region10: #{vgnae_encoder.3} parent=0 // pred_check
    %p12 = pneg %p11
  $region11: #{vgnae_encoder.3} parent=0 // pred_check_branch
    %14 = sbr.rel (%p12) target = $region13
  $region12: #{vgnae_encoder.3} parent=0 // pred_region
    %15 = vst [vmem:[#allocation2] sm:$0xff] 0.0
    %16 = vst [vmem:[#allocation2 + $0x8] sm:$0xff] 0.0
    %17 = vst [vmem:[#allocation2 + $0x10] sm:$0xff] 0.0
    %18 = vst [vmem:[#allocation2 + $0x18] sm:$0xff] 0.0
    %19 = vst [vmem:[#allocation2 + $0x20] sm:$0xff] 0.0
    %20 = vst [vmem:[#allocation2 + $0x28] sm:$0xff] 0.0
    %21 = vst [vmem:[#allocation2 + $0x30] sm:$0xff] 0.0
    %22 = vst [vmem:[#allocation2 + $0x38] sm:$0xff] 0.0
    %23 = vst [vmem:[#allocation2 + $0x40] sm:$0xff] 0.0
    %24 = vst [vmem:[#allocation2 + $0x48] sm:$0xff] 0.0
    %25 = vst [vmem:[#allocation2 + $0x50] sm:$0xff] 0.0
    %26 = vst [vmem:[#allocation2 + $0x58] sm:$0xff] 0.0
    %27 = vst [vmem:[#allocation2 + $0x60] sm:$0xff] 0.0
    %28 = vst [vmem:[#allocation2 + $0x68] sm:$0xff] 0.0
    %29 = vst [vmem:[#allocation2 + $0x70] sm:$0xff] 0.0
    %30 = vst [vmem:[#allocation2 + $0x78] sm:$0xff] 0.0
    %31 = vst [vmem:[#allocation2 + $0x80] sm:$0xff] 0.0
    %32 = vst [vmem:[#allocation2 + $0x88] sm:$0xff] 0.0
    %33 = vst [vmem:[#allocation2 + $0x90] sm:$0xff] 0.0
    %34 = vst [vmem:[#allocation2 + $0x98] sm:$0xff] 0.0
    %35 = vst [vmem:[#allocation2 + $0xa0] sm:$0xff] 0.0
    %36 = vst [vmem:[#allocation2 + $0xa8] sm:$0xff] 0.0
    %37 = vst [vmem:[#allocation2 + $0xb0] sm:$0xff] 0.0
    %38 = vst [vmem:[#allocation2 + $0xb8] sm:$0xff] 0.0
    %39 = vst [vmem:[#allocation2 + $0xc0] sm:$0xff] 0.0
    %40 = vst [vmem:[#allocation2 + $0xc8] sm:$0xff] 0.0
    %41 = vst [vmem:[#allocation2 + $0xd0] sm:$0xff] 0.0
    %42 = vst [vmem:[#allocation2 + $0xd8] sm:$0xff] 0.0
    %43 = vst [vmem:[#allocation2 + $0xe0] sm:$0xff] 0.0
    %44 = vst [vmem:[#allocation2 + $0xe8] sm:$0xff] 0.0
    %45 = vst [vmem:[#allocation2 + $0xf0] sm:$0xff] 0.0
    %46 = vst [vmem:[#allocation2 + $0xf8] sm:$0xff] 0.0
  $region13: #{vgnae_encoder.3} parent=0 // pred_fallthru
    _
  %v47 = vld [vmem:[#allocation2] sm:$0xff]
  %v48 = vld [vmem:[#allocation2 + $0x8] sm:$0xff]
  %v49 = vld [vmem:[#allocation2 + $0x10] sm:$0xff]
  %v50 = vld [vmem:[#allocation2 + $0x18] sm:$0xff]
  %v51 = vld [vmem:[#allocation2 + $0x20] sm:$0xff]
  %v52 = vld [vmem:[#allocation2 + $0x28] sm:$0xff]
  %v53 = vld [vmem:[#allocation2 + $0x30] sm:$0xff]
  %v54 = vld [vmem:[#allocation2 + $0x38] sm:$0xff]
  %v55 = vld [vmem:[#allocation2 + $0x40] sm:$0xff]
  %v56 = vld [vmem:[#allocation2 + $0x48] sm:$0xff]
  %v57 = vld [vmem:[#allocation2 + $0x50] sm:$0xff]
  %v58 = vld [vmem:[#allocation2 + $0x58] sm:$0xff]
  %v59 = vld [vmem:[#allocation2 + $0x60] sm:$0xff]
  %v60 = vld [vmem:[#allocation2 + $0x68] sm:$0xff]
  %v61 = vld [vmem:[#allocation2 + $0x70] sm:$0xff]
  %v62 = vld [vmem:[#allocation2 + $0x78] sm:$0xff]
  %v63 = vld [vmem:[#allocation2 + $0x80] sm:$0xff]
  %v64 = vld [vmem:[#allocation2 + $0x88] sm:$0xff]
  %v65 = vld [vmem:[#allocation2 + $0x90] sm:$0xff]
  %v66 = vld [vmem:[#allocation2 + $0x98] sm:$0xff]
  %v67 = vld [vmem:[#allocation2 + $0xa0] sm:$0xff]
  %v68 = vld [vmem:[#allocation2 + $0xa8] sm:$0xff]
  %v69 = vld [vmem:[#allocation2 + $0xb0] sm:$0xff]
  %v70 = vld [vmem:[#allocation2 + $0xb8] sm:$0xff]
  %v71 = vld [vmem:[#allocation2 + $0xc0] sm:$0xff]
  %v72 = vld [vmem:[#allocation2 + $0xc8] sm:$0xff]
  %v73 = vld [vmem:[#allocation2 + $0xd0] sm:$0xff]
  %v74 = vld [vmem:[#allocation2 + $0xd8] sm:$0xff]
  %v75 = vld [vmem:[#allocation2 + $0xe0] sm:$0xff]
  %v76 = vld [vmem:[#allocation2 + $0xe8] sm:$0xff]
  %v77 = vld [vmem:[#allocation2 + $0xf0] sm:$0xff]
  %v78 = vld [vmem:[#allocation2 + $0xf8] sm:$0xff]
  %v79 = vld [vmem:[%s0] sm:$0xff]
  %v80 = vld [vmem:[%s0 + $0x8] sm:$0xff]
  %v81 = vld [vmem:[%s0 + $0x10] sm:$0xff]
  %v82 = vld [vmem:[%s0 + $0x18] sm:$0xff]
  %v83 = vld [vmem:[%s0 + $0x20] sm:$0xff]
  %v84 = vld [vmem:[%s0 + $0x28] sm:$0xff]
  %v85 = vld [vmem:[%s0 + $0x30] sm:$0xff]
  %v86 = vld [vmem:[%s0 + $0x38] sm:$0xff]
  %v87 = vld [vmem:[%s0 + $0x40] sm:$0xff]
  %v88 = vld [vmem:[%s0 + $0x48] sm:$0xff]
  %v89 = vld [vmem:[%s0 + $0x50] sm:$0xff]
  %v90 = vld [vmem:[%s0 + $0x58] sm:$0xff]
  %v91 = vld [vmem:[%s0 + $0x60] sm:$0xff]
  %v92 = vld [vmem:[%s0 + $0x68] sm:$0xff]
  %v93 = vld [vmem:[%s0 + $0x70] sm:$0xff]
  %v94 = vld [vmem:[%s0 + $0x78] sm:$0xff]
  %v95 = vld [vmem:[%s0 + $0x80] sm:$0xff]
  %v96 = vld [vmem:[%s0 + $0x88] sm:$0xff]
  %v97 = vld [vmem:[%s0 + $0x90] sm:$0xff]
  %v98 = vld [vmem:[%s0 + $0x98] sm:$0xff]
  %v99 = vld [vmem:[%s0 + $0xa0] sm:$0xff]
  %v100 = vld [vmem:[%s0 + $0xa8] sm:$0xff]
  %v101 = vld [vmem:[%s0 + $0xb0] sm:$0xff]
  %v102 = vld [vmem:[%s0 + $0xb8] sm:$0xff]
  %v103 = vld [vmem:[%s0 + $0xc0] sm:$0xff]
  %v104 = vld [vmem:[%s0 + $0xc8] sm:$0xff]
  %v105 = vld [vmem:[%s0 + $0xd0] sm:$0xff]
  %v106 = vld [vmem:[%s0 + $0xd8] sm:$0xff]
  %v107 = vld [vmem:[%s0 + $0xe0] sm:$0xff]
  %v108 = vld [vmem:[%s0 + $0xe8] sm:$0xff]
  %v109 = vld [vmem:[%s0 + $0xf0] sm:$0xff]
  %v110 = vld [vmem:[%s0 + $0xf8] sm:$0xff]
  %v111 = vld [vmem:[%s0 + $0x100] sm:$0xff]
  %v112 = vld [vmem:[%s0 + $0x108] sm:$0xff]
  %v113 = vld [vmem:[%s0 + $0x110] sm:$0xff]
  %v114 = vld [vmem:[%s0 + $0x118] sm:$0xff]
  %v115 = vld [vmem:[%s0 + $0x120] sm:$0xff]
  %v116 = vld [vmem:[%s0 + $0x128] sm:$0xff]
  %v117 = vld [vmem:[%s0 + $0x130] sm:$0xff]
  %v118 = vld [vmem:[%s0 + $0x138] sm:$0xff]
  %v119 = vld [vmem:[%s0 + $0x140] sm:$0xff]
  %v120 = vld [vmem:[%s0 + $0x148] sm:$0xff]
  %v121 = vld [vmem:[%s0 + $0x150] sm:$0xff]
  %v122 = vld [vmem:[%s0 + $0x158] sm:$0xff]
  %v123 = vld [vmem:[%s0 + $0x160] sm:$0xff]
  %v124 = vld [vmem:[%s0 + $0x168] sm:$0xff]
  %v125 = vld [vmem:[%s0 + $0x170] sm:$0xff]
  %v126 = vld [vmem:[%s0 + $0x178] sm:$0xff]
  %v127 = vld [vmem:[%s0 + $0x180] sm:$0xff]
  %v128 = vld [vmem:[%s0 + $0x188] sm:$0xff]
  %v129 = vld [vmem:[%s0 + $0x190] sm:$0xff]
  %v130 = vld [vmem:[%s0 + $0x198] sm:$0xff]
  %v131 = vld [vmem:[%s0 + $0x1a0] sm:$0xff]
  %v132 = vld [vmem:[%s0 + $0x1a8] sm:$0xff]
  %v133 = vld [vmem:[%s0 + $0x1b0] sm:$0xff]
  %v134 = vld [vmem:[%s0 + $0x1b8] sm:$0xff]
  %v135 = vld [vmem:[%s0 + $0x1c0] sm:$0xff]
  %v136 = vld [vmem:[%s0 + $0x1c8] sm:$0xff]
  %v137 = vld [vmem:[%s0 + $0x1d0] sm:$0xff]
  %v138 = vld [vmem:[%s0 + $0x1d8] sm:$0xff]
  %v139 = vld [vmem:[%s0 + $0x1e0] sm:$0xff]
  %v140 = vld [vmem:[%s0 + $0x1e8] sm:$0xff]
  %v141 = vld [vmem:[%s0 + $0x1f0] sm:$0xff]
  %v142 = vld [vmem:[%s0 + $0x1f8] sm:$0xff]
  %v143 = vld [vmem:[%s1] sm:$0xff]
  %v144 = vld [vmem:[%s1 + $0x8] sm:$0xff]
  %v145 = vld [vmem:[%s1 + $0x10] sm:$0xff]
  %v146 = vld [vmem:[%s1 + $0x18] sm:$0xff]
  %v147 = vld [vmem:[%s1 + $0x20] sm:$0xff]
  %v148 = vld [vmem:[%s1 + $0x28] sm:$0xff]
  %v149 = vld [vmem:[%s1 + $0x30] sm:$0xff]
  %v150 = vld [vmem:[%s1 + $0x38] sm:$0xff]
  %v151 = vld [vmem:[%s1 + $0x40] sm:$0xff]
  %v152 = vld [vmem:[%s1 + $0x48] sm:$0xff]
  %v153 = vld [vmem:[%s1 + $0x50] sm:$0xff]
  %v154 = vld [vmem:[%s1 + $0x58] sm:$0xff]
  %v155 = vld [vmem:[%s1 + $0x60] sm:$0xff]
  %v156 = vld [vmem:[%s1 + $0x68] sm:$0xff]
  %v157 = vld [vmem:[%s1 + $0x70] sm:$0xff]
  %v158 = vld [vmem:[%s1 + $0x78] sm:$0xff]
  %v159 = vld [vmem:[%s1 + $0x80] sm:$0xff]
  %v160 = vld [vmem:[%s1 + $0x88] sm:$0xff]
  %v161 = vld [vmem:[%s1 + $0x90] sm:$0xff]
  %v162 = vld [vmem:[%s1 + $0x98] sm:$0xff]
  %v163 = vld [vmem:[%s1 + $0xa0] sm:$0xff]
  %v164 = vld [vmem:[%s1 + $0xa8] sm:$0xff]
  %v165 = vld [vmem:[%s1 + $0xb0] sm:$0xff]
  %v166 = vld [vmem:[%s1 + $0xb8] sm:$0xff]
  %v167 = vld [vmem:[%s1 + $0xc0] sm:$0xff]
  %v168 = vld [vmem:[%s1 + $0xc8] sm:$0xff]
  %v169 = vld [vmem:[%s1 + $0xd0] sm:$0xff]
  %v170 = vld [vmem:[%s1 + $0xd8] sm:$0xff]
  %v171 = vld [vmem:[%s1 + $0xe0] sm:$0xff]
  %v172 = vld [vmem:[%s1 + $0xe8] sm:$0xff]
  %v173 = vld [vmem:[%s1 + $0xf0] sm:$0xff]
  %v174 = vld [vmem:[%s1 + $0xf8] sm:$0xff]
  %175 = vmatprep.subr.mxu0 0.0
  %176 = vmatpush1.msra.mxu0 %v143
  %177 = vmatprep.subr.mxu0 0.0
  %178 = vmatpush1.msra.mxu0 %v144
  %179 = vmatprep.subr.mxu0 0.0
  %180 = vmatpush1.msra.mxu0 %v145
  %181 = vmatprep.subr.mxu0 0.0
  %182 = vmatpush1.msra.mxu0 %v146
  %183 = vmatprep.subr.mxu0 0.0
  %184 = vmatpush1.msra.mxu0 %v147
  %185 = vmatprep.subr.mxu0 0.0
  %186 = vmatpush1.msra.mxu0 %v148
  %187 = vmatprep.subr.mxu0 0.0
  %188 = vmatpush1.msra.mxu0 %v149
  %189 = vmatprep.subr.mxu0 0.0
  %190 = vmatpush1.msra.mxu0 %v150
  %191 = vmatprep.subr.mxu0 0.0
  %192 = vmatpush1.msra.mxu0 %v151
  %193 = vmatprep.subr.mxu0 0.0
  %194 = vmatpush1.msra.mxu0 %v152
  %195 = vmatprep.subr.mxu0 0.0
  %196 = vmatpush1.msra.mxu0 %v153
  %197 = vmatprep.subr.mxu0 0.0
  %198 = vmatpush1.msra.mxu0 %v154
  %199 = vmatprep.subr.mxu0 0.0
  %200 = vmatpush1.msra.mxu0 %v155
  %201 = vmatprep.subr.mxu0 0.0
  %202 = vmatpush1.msra.mxu0 %v156
  %203 = vmatprep.subr.mxu0 0.0
  %204 = vmatpush1.msra.mxu0 %v157
  %205 = vmatprep.subr.mxu0 0.0
  %206 = vmatpush1.msra.mxu0 %v158
  %207 = vmatprep.subr.mxu0 0.0
  %208 = vmatpush1.msra.mxu0 %v159
  %209 = vmatprep.subr.mxu0 0.0
  %210 = vmatpush1.msra.mxu0 %v160
  %211 = vmatprep.subr.mxu0 0.0
  %212 = vmatpush1.msra.mxu0 %v161
  %213 = vmatprep.subr.mxu0 0.0
  %214 = vmatpush1.msra.mxu0 %v162
  %215 = vmatprep.subr.mxu0 0.0
  %216 = vmatpush1.msra.mxu0 %v163
  %217 = vmatprep.subr.mxu0 0.0
  %218 = vmatpush1.msra.mxu0 %v164
  %219 = vmatprep.subr.mxu0 0.0
  %220 = vmatpush1.msra.mxu0 %v165
  %221 = vmatprep.subr.mxu0 0.0
  %222 = vmatpush1.msra.mxu0 %v166
  %223 = vmatprep.subr.mxu0 0.0
  %224 = vmatpush1.msra.mxu0 %v167
  %225 = vmatprep.subr.mxu0 0.0
  %226 = vmatpush1.msra.mxu0 %v168
  %227 = vmatprep.subr.mxu0 0.0
  %228 = vmatpush1.msra.mxu0 %v169
  %229 = vmatprep.subr.mxu0 0.0
  %230 = vmatpush1.msra.mxu0 %v170
  %231 = vmatprep.subr.mxu0 0.0
  %232 = vmatpush1.msra.mxu0 %v171
  %233 = vmatprep.subr.mxu0 0.0
  %234 = vmatpush1.msra.mxu0 %v172
  %235 = vmatprep.subr.mxu0 0.0
  %236 = vmatpush1.msra.mxu0 %v173
  %237 = vmatprep.subr.mxu0 0.0
  %238 = vmatpush1.msra.mxu0 %v174
  %239 = vmatprep.mubr.f32.mxu0 %v80
  %240 = vmatmul.mubr.f32.gmra.mrb[0].mxu0 %v79
  %v241 = vpop.f32.mrb[0].mxu0
  %v242 = vadd.f32 0.0, %v241
  %v243 = vpop.f32.mrb[0].mxu0
  %244 = vmatprep.mubr.f32.mxu0 %v82
  %245 = vmatmul.mubr.f32.gmra.mrb[0].mxu0 %v81
  %v246 = vpop.f32.mrb[0].mxu0
  %v247 = vadd.f32 0.0, %v246
  %v248 = vpop.f32.mrb[0].mxu0
  %249 = vmatprep.mubr.f32.mxu0 %v84
  %250 = vmatmul.mubr.f32.gmra.mrb[0].mxu0 %v83
  %v251 = vpop.f32.mrb[0].mxu0
  %v252 = vadd.f32 0.0, %v251
  %v253 = vpop.f32.mrb[0].mxu0
  %254 = vmatprep.mubr.f32.mxu0 %v86
  %255 = vmatmul.mubr.f32.gmra.mrb[0].mxu0 %v85
  %v256 = vpop.f32.mrb[0].mxu0
  %v257 = vadd.f32 0.0, %v256
  %v258 = vpop.f32.mrb[0].mxu0
  %259 = vmatprep.mubr.f32.mxu0 %v88
  %260 = vmatmul.mubr.f32.gmra.mrb[0].mxu0 %v87
  %v261 = vpop.f32.mrb[0].mxu0
  %v262 = vadd.f32 0.0, %v261
  %v263 = vpop.f32.mrb[0].mxu0
  %264 = vmatprep.mubr.f32.mxu0 %v90
  %265 = vmatmul.mubr.f32.gmra.mrb[0].mxu0 %v89
  %v266 = vpop.f32.mrb[0].mxu0
  %v267 = vadd.f32 0.0, %v266
  %v268 = vpop.f32.mrb[0].mxu0
  %269 = vmatprep.mubr.f32.mxu0 %v92
  %270 = vmatmul.mubr.f32.gmra.mrb[0].mxu0 %v91
  %v271 = vpop.f32.mrb[0].mxu0
  %v272 = vadd.f32 0.0, %v271
  %v273 = vpop.f32.mrb[0].mxu0
  %274 = vmatprep.mubr.f32.mxu0 %v94
  %275 = vmatmul.mubr.f32.gmra.mrb[0].mxu0 %v93
  %v276 = vpop.f32.mrb[0].mxu0
  %v277 = vadd.f32 0.0, %v276
  %v278 = vpop.f32.mrb[0].mxu0
  %279 = vmatprep.mubr.f32.mxu0 %v96
  %280 = vmatmul.mubr.f32.gmra.mrb[0].mxu0 %v95
  %v281 = vpop.f32.mrb[0].mxu0
  %v282 = vadd.f32 0.0, %v281
  %v283 = vpop.f32.mrb[0].mxu0
  %284 = vmatprep.mubr.f32.mxu0 %v98
  %285 = vmatmul.mubr.f32.gmra.mrb[0].mxu0 %v97
  %v286 = vpop.f32.mrb[0].mxu0
  %v287 = vadd.f32 0.0, %v286
  %v288 = vpop.f32.mrb[0].mxu0
  %289 = vmatprep.mubr.f32.mxu0 %v100
  %290 = vmatmul.mubr.f32.gmra.mrb[0].mxu0 %v99
  %v291 = vpop.f32.mrb[0].mxu0
  %v292 = vadd.f32 0.0, %v291
  %v293 = vpop.f32.mrb[0].mxu0
  %294 = vmatprep.mubr.f32.mxu0 %v102
  %295 = vmatmul.mubr.f32.gmra.mrb[0].mxu0 %v101
  %v296 = vpop.f32.mrb[0].mxu0
  %v297 = vadd.f32 0.0, %v296
  %v298 = vpop.f32.mrb[0].mxu0
  %299 = vmatprep.mubr.f32.mxu0 %v104
  %300 = vmatmul.mubr.f32.gmra.mrb[0].mxu0 %v103
  %v301 = vpop.f32.mrb[0].mxu0
  %v302 = vadd.f32 0.0, %v301
  %v303 = vpop.f32.mrb[0].mxu0
  %304 = vmatprep.mubr.f32.mxu0 %v106
  %305 = vmatmul.mubr.f32.gmra.mrb[0].mxu0 %v105
  %v306 = vpop.f32.mrb[0].mxu0
  %v307 = vadd.f32 0.0, %v306
  %v308 = vpop.f32.mrb[0].mxu0
  %309 = vmatprep.mubr.f32.mxu0 %v108
  %310 = vmatmul.mubr.f32.gmra.mrb[0].mxu0 %v107
  %v311 = vpop.f32.mrb[0].mxu0
  %v312 = vadd.f32 0.0, %v311
  %v313 = vpop.f32.mrb[0].mxu0
  %314 = vmatprep.mubr.f32.mxu0 %v110
  %315 = vmatmul.mubr.f32.gmra.mrb[0].mxu0 %v109
  %v316 = vpop.f32.mrb[0].mxu0
  %v317 = vadd.f32 0.0, %v316
  %v318 = vpop.f32.mrb[0].mxu0
  %319 = vmatprep.mubr.f32.mxu0 %v112
  %320 = vmatmul.mubr.f32.gmra.mrb[0].mxu0 %v111
  %v321 = vpop.f32.mrb[0].mxu0
  %v322 = vadd.f32 0.0, %v321
  %v323 = vpop.f32.mrb[0].mxu0
  %324 = vmatprep.mubr.f32.mxu0 %v114
  %325 = vmatmul.mubr.f32.gmra.mrb[0].mxu0 %v113
  %v326 = vpop.f32.mrb[0].mxu0
  %v327 = vadd.f32 0.0, %v326
  %v328 = vpop.f32.mrb[0].mxu0
  %329 = vmatprep.mubr.f32.mxu0 %v116
  %330 = vmatmul.mubr.f32.gmra.mrb[0].mxu0 %v115
  %v331 = vpop.f32.mrb[0].mxu0
  %v332 = vadd.f32 0.0, %v331
  %v333 = vpop.f32.mrb[0].mxu0
  %334 = vmatprep.mubr.f32.mxu0 %v118
  %335 = vmatmul.mubr.f32.gmra.mrb[0].mxu0 %v117
  %v336 = vpop.f32.mrb[0].mxu0
  %v337 = vadd.f32 0.0, %v336
  %v338 = vpop.f32.mrb[0].mxu0
  %339 = vmatprep.mubr.f32.mxu0 %v120
  %340 = vmatmul.mubr.f32.gmra.mrb[0].mxu0 %v119
  %v341 = vpop.f32.mrb[0].mxu0
  %v342 = vadd.f32 0.0, %v341
  %v343 = vpop.f32.mrb[0].mxu0
  %344 = vmatprep.mubr.f32.mxu0 %v122
  %345 = vmatmul.mubr.f32.gmra.mrb[0].mxu0 %v121
  %v346 = vpop.f32.mrb[0].mxu0
  %v347 = vadd.f32 0.0, %v346
  %v348 = vpop.f32.mrb[0].mxu0
  %349 = vmatprep.mubr.f32.mxu0 %v124
  %350 = vmatmul.mubr.f32.gmra.mrb[0].mxu0 %v123
  %v351 = vpop.f32.mrb[0].mxu0
  %v352 = vadd.f32 0.0, %v351
  %v353 = vpop.f32.mrb[0].mxu0
  %354 = vmatprep.mubr.f32.mxu0 %v126
  %355 = vmatmul.mubr.f32.gmra.mrb[0].mxu0 %v125
  %v356 = vpop.f32.mrb[0].mxu0
  %v357 = vadd.f32 0.0, %v356
  %v358 = vpop.f32.mrb[0].mxu0
  %359 = vmatprep.mubr.f32.mxu0 %v128
  %360 = vmatmul.mubr.f32.gmra.mrb[0].mxu0 %v127
  %v361 = vpop.f32.mrb[0].mxu0
  %v362 = vadd.f32 0.0, %v361
  %v363 = vpop.f32.mrb[0].mxu0
  %364 = vmatprep.mubr.f32.mxu0 %v130
  %365 = vmatmul.mubr.f32.gmra.mrb[0].mxu0 %v129
  %v366 = vpop.f32.mrb[0].mxu0
  %v367 = vadd.f32 0.0, %v366
  %v368 = vpop.f32.mrb[0].mxu0
  %369 = vmatprep.mubr.f32.mxu0 %v132
  %370 = vmatmul.mubr.f32.gmra.mrb[0].mxu0 %v131
  %v371 = vpop.f32.mrb[0].mxu0
  %v372 = vadd.f32 0.0, %v371
  %v373 = vpop.f32.mrb[0].mxu0
  %374 = vmatprep.mubr.f32.mxu0 %v134
  %375 = vmatmul.mubr.f32.gmra.mrb[0].mxu0 %v133
  %v376 = vpop.f32.mrb[0].mxu0
  %v377 = vadd.f32 0.0, %v376
  %v378 = vpop.f32.mrb[0].mxu0
  %379 = vmatprep.mubr.f32.mxu0 %v136
  %380 = vmatmul.mubr.f32.gmra.mrb[0].mxu0 %v135
  %v381 = vpop.f32.mrb[0].mxu0
  %v382 = vadd.f32 0.0, %v381
  %v383 = vpop.f32.mrb[0].mxu0
  %384 = vmatprep.mubr.f32.mxu0 %v138
  %385 = vmatmul.mubr.f32.gmra.mrb[0].mxu0 %v137
  %v386 = vpop.f32.mrb[0].mxu0
  %v387 = vadd.f32 0.0, %v386
  %v388 = vpop.f32.mrb[0].mxu0
  %389 = vmatprep.mubr.f32.mxu0 %v140
  %390 = vmatmul.mubr.f32.gmra.mrb[0].mxu0 %v139
  %v391 = vpop.f32.mrb[0].mxu0
  %v392 = vadd.f32 0.0, %v391
  %v393 = vpop.f32.mrb[0].mxu0
  %394 = vmatprep.mubr.f32.mxu0 %v142
  %395 = vmatmul.mubr.f32.gmra.mrb[0].mxu0 %v141
  %v396 = vpop.f32.mrb[0].mxu0
  %v397 = vadd.f32 0.0, %v396
  %v398 = vpop.f32.mrb[0].mxu0
  %399 = vdwg.mxu0
  %v400 = vadd.f32 %v47, %v242
  %v401 = vadd.f32 %v48, %v247
  %v402 = vadd.f32 %v49, %v252
  %v403 = vadd.f32 %v50, %v257
  %v404 = vadd.f32 %v51, %v262
  %v405 = vadd.f32 %v52, %v267
  %v406 = vadd.f32 %v53, %v272
  %v407 = vadd.f32 %v54, %v277
  %v408 = vadd.f32 %v55, %v282
  %v409 = vadd.f32 %v56, %v287
  %v410 = vadd.f32 %v57, %v292
  %v411 = vadd.f32 %v58, %v297
  %v412 = vadd.f32 %v59, %v302
  %v413 = vadd.f32 %v60, %v307
  %v414 = vadd.f32 %v61, %v312
  %v415 = vadd.f32 %v62, %v317
  %v416 = vadd.f32 %v63, %v322
  %v417 = vadd.f32 %v64, %v327
  %v418 = vadd.f32 %v65, %v332
  %v419 = vadd.f32 %v66, %v337
  %v420 = vadd.f32 %v67, %v342
  %v421 = vadd.f32 %v68, %v347
  %v422 = vadd.f32 %v69, %v352
  %v423 = vadd.f32 %v70, %v357
  %v424 = vadd.f32 %v71, %v362
  %v425 = vadd.f32 %v72, %v367
  %v426 = vadd.f32 %v73, %v372
  %v427 = vadd.f32 %v74, %v377
  %v428 = vadd.f32 %v75, %v382
  %v429 = vadd.f32 %v76, %v387
  %v430 = vadd.f32 %v77, %v392
  %v431 = vadd.f32 %v78, %v397
  %432 = vst [vmem:[#allocation2] sm:$0xff] %v400
  %433 = vst [vmem:[#allocation2 + $0x8] sm:$0xff] %v401
  %434 = vst [vmem:[#allocation2 + $0x10] sm:$0xff] %v402
  %435 = vst [vmem:[#allocation2 + $0x18] sm:$0xff] %v403
  %436 = vst [vmem:[#allocation2 + $0x20] sm:$0xff] %v404
  %437 = vst [vmem:[#allocation2 + $0x28] sm:$0xff] %v405
  %438 = vst [vmem:[#allocation2 + $0x30] sm:$0xff] %v406
  %439 = vst [vmem:[#allocation2 + $0x38] sm:$0xff] %v407
  %440 = vst [vmem:[#allocation2 + $0x40] sm:$0xff] %v408
  %441 = vst [vmem:[#allocation2 + $0x48] sm:$0xff] %v409
  %442 = vst [vmem:[#allocation2 + $0x50] sm:$0xff] %v410
  %443 = vst [vmem:[#allocation2 + $0x58] sm:$0xff] %v411
  %444 = vst [vmem:[#allocation2 + $0x60] sm:$0xff] %v412
  %445 = vst [vmem:[#allocation2 + $0x68] sm:$0xff] %v413
  %446 = vst [vmem:[#allocation2 + $0x70] sm:$0xff] %v414
  %447 = vst [vmem:[#allocation2 + $0x78] sm:$0xff] %v415
  %448 = vst [vmem:[#allocation2 + $0x80] sm:$0xff] %v416
  %449 = vst [vmem:[#allocation2 + $0x88] sm:$0xff] %v417
  %450 = vst [vmem:[#allocation2 + $0x90] sm:$0xff] %v418
  %451 = vst [vmem:[#allocation2 + $0x98] sm:$0xff] %v419
  %452 = vst [vmem:[#allocation2 + $0xa0] sm:$0xff] %v420
  %453 = vst [vmem:[#allocation2 + $0xa8] sm:$0xff] %v421
  %454 = vst [vmem:[#allocation2 + $0xb0] sm:$0xff] %v422
  %455 = vst [vmem:[#allocation2 + $0xb8] sm:$0xff] %v423
  %456 = vst [vmem:[#allocation2 + $0xc0] sm:$0xff] %v424
  %457 = vst [vmem:[#allocation2 + $0xc8] sm:$0xff] %v425
  %458 = vst [vmem:[#allocation2 + $0xd0] sm:$0xff] %v426
  %459 = vst [vmem:[#allocation2 + $0xd8] sm:$0xff] %v427
  %460 = vst [vmem:[#allocation2 + $0xe0] sm:$0xff] %v428
  %461 = vst [vmem:[#allocation2 + $0xe8] sm:$0xff] %v429
  %462 = vst [vmem:[#allocation2 + $0xf0] sm:$0xff] %v430
  %463 = vst [vmem:[#allocation2 + $0xf8] sm:$0xff] %v431
  // Predicated region
  $region14: #{vgnae_encoder.3} parent=0 // pred_check
    %p464 = pneg %p11
  $region15: #{vgnae_encoder.3} parent=0 // pred_check_branch
    %466 = sbr.rel (%p464) target = $region17
  $region16: #{vgnae_encoder.3} parent=0 // pred_region
    %v467 = vld [vmem:[#allocation2] sm:$0xff]
    %v468 = vld [vmem:[#allocation2 + $0x8] sm:$0xff]
    %v469 = vld [vmem:[#allocation2 + $0x10] sm:$0xff]
    %v470 = vld [vmem:[#allocation2 + $0x18] sm:$0xff]
    %v471 = vld [vmem:[#allocation2 + $0x20] sm:$0xff]
    %v472 = vld [vmem:[#allocation2 + $0x28] sm:$0xff]
    %v473 = vld [vmem:[#allocation2 + $0x30] sm:$0xff]
    %v474 = vld [vmem:[#allocation2 + $0x38] sm:$0xff]
    %v475 = vld [vmem:[#allocation2 + $0x40] sm:$0xff]
    %v476 = vld [vmem:[#allocation2 + $0x48] sm:$0xff]
    %v477 = vld [vmem:[#allocation2 + $0x50] sm:$0xff]
    %v478 = vld [vmem:[#allocation2 + $0x58] sm:$0xff]
    %v479 = vld [vmem:[#allocation2 + $0x60] sm:$0xff]
    %v480 = vld [vmem:[#allocation2 + $0x68] sm:$0xff]
    %v481 = vld [vmem:[#allocation2 + $0x70] sm:$0xff]
    %v482 = vld [vmem:[#allocation2 + $0x78] sm:$0xff]
    %v483 = vld [vmem:[#allocation2 + $0x80] sm:$0xff]
    %v484 = vld [vmem:[#allocation2 + $0x88] sm:$0xff]
    %v485 = vld [vmem:[#allocation2 + $0x90] sm:$0xff]
    %v486 = vld [vmem:[#allocation2 + $0x98] sm:$0xff]
    %v487 = vld [vmem:[#allocation2 + $0xa0] sm:$0xff]
    %v488 = vld [vmem:[#allocation2 + $0xa8] sm:$0xff]
    %v489 = vld [vmem:[#allocation2 + $0xb0] sm:$0xff]
    %v490 = vld [vmem:[#allocation2 + $0xb8] sm:$0xff]
    %v491 = vld [vmem:[#allocation2 + $0xc0] sm:$0xff]
    %v492 = vld [vmem:[#allocation2 + $0xc8] sm:$0xff]
    %v493 = vld [vmem:[#allocation2 + $0xd0] sm:$0xff]
    %v494 = vld [vmem:[#allocation2 + $0xd8] sm:$0xff]
    %v495 = vld [vmem:[#allocation2 + $0xe0] sm:$0xff]
    %v496 = vld [vmem:[#allocation2 + $0xe8] sm:$0xff]
    %v497 = vld [vmem:[#allocation2 + $0xf0] sm:$0xff]
    %v498 = vld [vmem:[#allocation2 + $0xf8] sm:$0xff]
    %499 = vst [vmem:[%s2] sm:$0xff] %v467
    %500 = vst [vmem:[%s2 + $0x8] sm:$0xff] %v468
    %501 = vst [vmem:[%s2 + $0x10] sm:$0xff] %v469
    %502 = vst [vmem:[%s2 + $0x18] sm:$0xff] %v470
    %503 = vst [vmem:[%s2 + $0x20] sm:$0xff] %v471
    %504 = vst [vmem:[%s2 + $0x28] sm:$0xff] %v472
    %505 = vst [vmem:[%s2 + $0x30] sm:$0xff] %v473
    %506 = vst [vmem:[%s2 + $0x38] sm:$0xff] %v474
    %507 = vst [vmem:[%s2 + $0x40] sm:$0xff] %v475
    %508 = vst [vmem:[%s2 + $0x48] sm:$0xff] %v476
    %509 = vst [vmem:[%s2 + $0x50] sm:$0xff] %v477
    %510 = vst [vmem:[%s2 + $0x58] sm:$0xff] %v478
    %511 = vst [vmem:[%s2 + $0x60] sm:$0xff] %v479
    %512 = vst [vmem:[%s2 + $0x68] sm:$0xff] %v480
    %513 = vst [vmem:[%s2 + $0x70] sm:$0xff] %v481
    %514 = vst [vmem:[%s2 + $0x78] sm:$0xff] %v482
    %515 = vst [vmem:[%s2 + $0x80] sm:$0xff] %v483
    %516 = vst [vmem:[%s2 + $0x88] sm:$0xff] %v484
    %517 = vst [vmem:[%s2 + $0x90] sm:$0xff] %v485
    %518 = vst [vmem:[%s2 + $0x98] sm:$0xff] %v486
    %519 = vst [vmem:[%s2 + $0xa0] sm:$0xff] %v487
    %520 = vst [vmem:[%s2 + $0xa8] sm:$0xff] %v488
    %521 = vst [vmem:[%s2 + $0xb0] sm:$0xff] %v489
    %522 = vst [vmem:[%s2 + $0xb8] sm:$0xff] %v490
    %523 = vst [vmem:[%s2 + $0xc0] sm:$0xff] %v491
    %524 = vst [vmem:[%s2 + $0xc8] sm:$0xff] %v492
    %525 = vst [vmem:[%s2 + $0xd0] sm:$0xff] %v493
    %526 = vst [vmem:[%s2 + $0xd8] sm:$0xff] %v494
    %527 = vst [vmem:[%s2 + $0xe0] sm:$0xff] %v495
    %528 = vst [vmem:[%s2 + $0xe8] sm:$0xff] %v496
    %529 = vst [vmem:[%s2 + $0xf0] sm:$0xff] %v497
    %530 = vst [vmem:[%s2 + $0xf8] sm:$0xff] %v498
  $region17: #{vgnae_encoder.3} parent=0 // pred_fallthru
    _
  // Predicated region
  $region18: #{vgnae_encoder.3} parent=0 // pred_check
    _
  $region19: #{vgnae_encoder.3} parent=0 // pred_check_branch
    %532 = sbr.rel (0) target = $region21
  $region20: #{vgnae_encoder.3} parent=0 // pred_region
    _
  $region21: #{vgnae_encoder.3} parent=0 // pred_fallthru
    _
  // Predicated region
  $region22: #{vgnae_encoder.3} parent=0 // pred_check
    _
  $region23: #{vgnae_encoder.3} parent=0 // pred_check_branch
    %534 = sbr.rel (0) target = $region25
  $region24: #{vgnae_encoder.3} parent=0 // pred_region
    _
  $region25: #{vgnae_encoder.3} parent=0 // pred_fallthru
    _

</llo_original>
